<compile_context>
chip_gen: v7x
topology: tpu7x:2x2x1
jax: 0.10.0
libtpu: 0.0.40
codegen_flags: <defaults>
</compile_context>

<pallas_src>
import math

import jax
import jax.numpy as jnp
from jax.experimental import pallas as pl
from jax.experimental.pallas import tpu as pltpu

_LANE = 128

# Below this total size, XLA's fused transpose beats a pallas_call (fixed
# call overhead + masked vst.msk stores when M, N < 128 dominate).
_XLA_FALLBACK_BYTES = 512 * 1024

# Planes smaller than this are packed whole into batch blocks instead of
# being tiled (128x128 tiles of a 16x16 plane are pure overhead).
_SMALL_PLANE_BYTES = 256 * 1024


def _round_up(x: int, m: int) -> int:
    return -(-x // m) * m


def _is_v7x() -> bool:
    try:
        kind = jax.devices()[0].device_kind.lower()
    except Exception:
        return False
    return "v7" in kind


def _budgets(itemsize: int) -> tuple[int, int, int]:
    """Returns (per-dim element cap, per-tile byte budget, vmem_limit_bytes).

    The double-buffered in+out footprint of the tiled path is 4x the per-tile
    byte budget; Mosaic may additionally materialize an internal VMEM copy
    for the in-tile transpose, hence the generous vmem_limit headroom.
    """
    if _is_v7x():
        # 64 MiB physical VMEM per TC: 8 MiB tiles -> 32 MiB double-buffered
        # footprint, 48 MiB scoped limit leaves ~16 MiB for internal scratch.
        return 2048, 8 * 1024 * 1024, 48 * 1024 * 1024
    # v5e / v6e (or unknown generation): 512-elem f32 tiles already sit at
    # ~85% of HBM roofline; narrow dtypes may stretch to 2048 along one dim
    # at the same byte cost (amortizes per-step overhead for packed dtypes).
    dim_cap = {4: 512, 2: 2048, 1: 2048}.get(itemsize, 512)
    return dim_cap, 4 * 1024 * 1024, 32 * 1024 * 1024


def _pick_tiles(M: int, N: int, itemsize: int,
                dim_cap: int, tile_bytes_budget: int) -> tuple[int, int]:
    """Largest 128-aligned (tm, tn) within the per-dim cap and byte budget."""

    def pick(dim: int) -> int:
        cap = _round_up(max(dim, 1), _LANE)
        c = dim_cap
        while c > _LANE and c > cap:
            c //= 2
        return max(c, _LANE)

    tm, tn = pick(M), pick(N)
    # Shrink (keeping 128-alignment) until a single in-tile fits the budget.
    while tm * tn * itemsize > tile_bytes_budget and (tm > _LANE or tn > _LANE):
        if tm >= tn and tm > _LANE:
            tm //= 2
        else:
            tn //= 2
    return tm, tn


def _transpose2d_kernel(x_ref, o_ref):
    # (tm, tn) -> (tn, tm); lowers to the XLU transpose.
    o_ref[...] = jnp.swapaxes(x_ref[...], 0, 1)


def _transpose3d_kernel(x_ref, o_ref):
    # (bt, M, N) -> (bt, N, M); batched small-plane transpose.
    o_ref[...] = jnp.swapaxes(x_ref[...], 1, 2)


def transpose_last_two(x: jax.Array) -> jax.Array:
    """Pallas kernel equivalent of torch.Tensor.transpose(-2, -1)."""
    assert x.ndim >= 2
    *lead, M, N = x.shape
    itemsize = jnp.dtype(x.dtype).itemsize
    total_bytes = x.size * itemsize

    # Degenerate / tiny inputs: XLA's fused transpose wins here, and empty
    # tensors get an explicit early-return instead of a 0-size grid.
    if x.size == 0 or M == 0 or N == 0 or total_bytes <= _XLA_FALLBACK_BYTES:
        return jnp.swapaxes(x, -2, -1)

    B = int(math.prod(lead))
    x3 = x.reshape(B, M, N)  # pure reshape, no data movement
    plane_bytes = M * N * itemsize
    dim_cap, tile_budget, vmem_limit = _budgets(itemsize)

    cost = pl.CostEstimate(
        flops=0, transcendentals=0, bytes_accessed=2 * total_bytes
    )

    if B > 1 and plane_bytes <= _SMALL_PLANE_BYTES:
        # Small-plane path: one block holds `bt` whole (M, N) planes so DMAs
        # stay large and per-grid-step overhead amortizes.
        # NOTE: the (8, 128) divisibility rule is waived only because the
        # block's last two dims equal the full array dims -- never tile M/N
        # inside this branch.
        assert (M, N) == x3.shape[1:]
        bt = max(1, min(B, tile_budget // max(plane_bytes, 1)))
        out3 = pl.pallas_call(
            _transpose3d_kernel,
            out_shape=jax.ShapeDtypeStruct((B, N, M), x.dtype),
            grid_spec=pltpu.PrefetchScalarGridSpec(
                num_scalar_prefetch=0,
                grid=(pl.cdiv(B, bt),),
                in_specs=[pl.BlockSpec((bt, M, N), lambda b: (b, 0, 0))],
                out_specs=pl.BlockSpec((bt, N, M), lambda b: (b, 0, 0)),
            ),
            compiler_params=pltpu.CompilerParams(
                dimension_semantics=("parallel",),
                vmem_limit_bytes=vmem_limit,
            ),
            cost_estimate=cost,
        )(x3)
        return out3.reshape(*lead, N, M)

    # Tiled path: large 128-aligned tiles, cdiv grid (Pallas masks edge
    # blocks, so non-128-divisible M/N never force huge full-extent blocks).
    # Both tm and tn are multiples of 128, so input loads AND transposed
    # output stores stay lane-dense away from the edges.
    tm, tn = _pick_tiles(M, N, itemsize, dim_cap, tile_budget)
    gm, gn = pl.cdiv(M, tm), pl.cdiv(N, tn)

    # Put the largest parallel extent first so megacore / 2-TC sharding on
    # v7x still splits the work when B == 1.  The size-1 batch dim of each
    # block is squeezed (None) so Mosaic sees clean rank-2 tiles.
    if B >= max(gm, gn):
        grid = (B, gm, gn)
        in_spec = pl.BlockSpec((None, tm, tn), lambda b, i, j: (b, i, j))
        out_spec = pl.BlockSpec((None, tn, tm), lambda b, i, j: (b, j, i))
    else:
        grid = (gm, gn, B)
        in_spec = pl.BlockSpec((None, tm, tn), lambda i, j, b: (b, i, j))
        out_spec = pl.BlockSpec((None, tn, tm), lambda i, j, b: (b, j, i))

    out3 = pl.pallas_call(
        _transpose2d_kernel,
        out_shape=jax.ShapeDtypeStruct((B, N, M), x.dtype),
        grid_spec=pltpu.PrefetchScalarGridSpec(
            num_scalar_prefetch=0,
            grid=grid,
            in_specs=[in_spec],
            out_specs=out_spec,
        ),
        compiler_params=pltpu.CompilerParams(
            dimension_semantics=("parallel", "parallel", "parallel"),
            vmem_limit_bytes=vmem_limit,
        ),
        cost_estimate=cost,
    )(x3)
    return out3.reshape(*lead, N, M)


class TransposePallas:
    """Mirror of the PyTorch `Transpose(dim1, dim2)` module's forward."""

    def __init__(self, dim1: int, dim2: int):
        self.dim1 = dim1
        self.dim2 = dim2

    def __call__(self, x: jax.Array) -> jax.Array:
        nd = x.ndim
        d1 = self.dim1 % nd
        d2 = self.dim2 % nd
        if d1 == d2:
            return x
        if {d1, d2} == {nd - 2, nd - 1}:
            return transpose_last_two(x)
        # TODO(synk): non-trailing axis pairs fall back to jnp.swapaxes glue;
        # the trailing-axes case above is the Pallas hot path.
        return jnp.swapaxes(x, d1, d2)


if __name__ == "__main__":
    key = jax.random.PRNGKey(0)
    k1, k2, k3, k4, k5 = jax.random.split(key, 5)

    mod = TransposePallas(dim1=2, dim2=3)

    # 1) The module's canonical NCHW use-case (tiny tensor -> XLA fallback).
    x = jax.random.normal(k1, (2, 4, 16, 16), dtype=jnp.float32)
    y = jax.block_until_ready(mod(x))
    ref = jnp.swapaxes(x, 2, 3)
    assert y.shape == ref.shape, (y.shape, ref.shape)
    assert y.dtype == ref.dtype
    assert bool(jnp.array_equal(y, ref))

    # 2) Tiled Pallas path, B > 1, non-128-aligned dims (masked edge blocks).
    x2 = jax.random.normal(k2, (2, 1, 264, 392), dtype=jnp.float32)
    y2 = jax.block_until_ready(mod(x2))
    assert bool(jnp.array_equal(y2, jnp.swapaxes(x2, 2, 3)))

    # 3) Tiled Pallas path with B == 1 (exercises the (gm, gn, B) grid order).
    x3 = jax.random.normal(k3, (1, 1, 520, 392), dtype=jnp.float32)
    y3 = jax.block_until_ready(mod(x3))
    assert bool(jnp.array_equal(y3, jnp.swapaxes(x3, 2, 3)))

    # 4) Small-plane Pallas path (many small planes packed per batch block).
    x4 = jax.random.normal(k4, (8, 64, 16, 32), dtype=jnp.float32)
    y4 = jax.block_until_ready(mod(x4))
    assert bool(jnp.array_equal(y4, jnp.swapaxes(x4, 2, 3)))

    # 5) bf16 tiled path (exercises itemsize-aware tile caps).
    x5 = jax.random.normal(k5, (1, 1, 520, 640), dtype=jnp.float32).astype(jnp.bfloat16)
    y5 = jax.block_until_ready(mod(x5))
    assert bool(jnp.array_equal(y5, jnp.swapaxes(x5, 2, 3)))

    # 6) Non-trailing axis pair falls back to jnp.swapaxes glue.
    mod13 = TransposePallas(dim1=1, dim2=3)
    y6 = jax.block_until_ready(mod13(x))
    assert bool(jnp.array_equal(y6, jnp.swapaxes(x, 1, 3)))

    print("KERNEL_OK")
</pallas_src>

<mosaic_0001>
module attributes {stable_mosaic.version = 11 : i64} {
  func.func @_transpose2d_kernel(%arg0: i32, %arg1: i32, %arg2: i32, %arg3: memref<1x256x512xf32, #tpu.memory_space<vmem>>, %arg4: memref<1x512x256xf32, #tpu.memory_space<vmem>>) attributes {dimension_semantics = [#tpu.dimension_semantics<parallel>, #tpu.dimension_semantics<parallel>, #tpu.dimension_semantics<parallel>], iteration_bounds = array<i64: 2, 2, 1>, scalar_prefetch = 0 : i64, scratch_operands = 0 : i64, tpu.core_type = #tpu.core_type<tc>, window_params = [{transform_indices = @transform_0, window_bounds = array<i64: 1, 256, 512>}, {transform_indices = @transform_1, window_bounds = array<i64: 1, 512, 256>}]} {
    %c0 = arith.constant 0 : index
    %c0_0 = arith.constant 0 : index
    %c0_1 = arith.constant 0 : index
    %0 = vector.load %arg3[%c0, %c0_0, %c0_1] : memref<1x256x512xf32, #tpu.memory_space<vmem>>, vector<1x256x512xf32>
    %1 = vector.shape_cast %0 : vector<1x256x512xf32> to vector<256x512xf32>
    %2 = tpu.transpose %1, [1, 0] : vector<256x512xf32> -> vector<512x256xf32>
    %c0_2 = arith.constant 0 : index
    %c0_3 = arith.constant 0 : index
    %c0_4 = arith.constant 0 : index
    %3 = vector.load %arg4[%c0_2, %c0_3, %c0_4] : memref<1x512x256xf32, #tpu.memory_space<vmem>>, vector<1x512x256xf32>
    %4 = vector.shape_cast %3 : vector<1x512x256xf32> to vector<512x256xf32>
    %5 = vector.shape_cast %2 : vector<512x256xf32> to vector<1x512x256xf32>
    tpu.vector_store %arg4[%c0_2, %c0_3, %c0_4], %5 {strides = array<i32>} : memref<1x512x256xf32, #tpu.memory_space<vmem>>, vector<1x512x256xf32>,
    return
  }
  func.func @transform_0(%arg0: i32, %arg1: i32, %arg2: i32) -> (i32, i32, i32) {
    %c0_i32 = arith.constant 0 : i32
    return %arg0, %arg1, %arg2 : i32, i32, i32
  }
  func.func @transform_1(%arg0: i32, %arg1: i32, %arg2: i32) -> (i32, i32, i32) {
    %c0_i32 = arith.constant 0 : i32
    return %arg0, %arg2, %arg1 : i32, i32, i32
  }
}

</mosaic_0001>

<llo_original>
// kernel: tpu_custom_call.1
$region0: #{tpu_custom_call.1}
  #allocation0 [shape = 'u32[]', space=smem, size = 0x4, offset = 0x4, fixed_abs, tag = 'smem constant byte address 0x4 - core index']
  #allocation1 [shape = 'u32[144,128]{1,0:T(1,128)}', space=vmem, size = 0x12000, scoped, tag = 'internal scratch']
  %s0 = inlined_call_operand.hbm [shape: f32[2,264,392], index: 0, kind: input, shape index: {}]
  %s1 = inlined_call_operand.vmem [shape: f32[2,392,264], index: 1, kind: output, shape index: {}]
  %s2 = sld [smem:[#allocation0]]
  $region131: #{tpu_custom_call.1} parent=0
    _
  %s4 = ssub.s32 1, %s2
  %s5 = scalar_select 0, %s4, %s2
  $region1: #{tpu_custom_call.1} parent=0
    #allocation2 [shape = 'u8[1048576]{0}', space=vmem, size = 0x100000, scoped, tag = 'input window, operand 0']
    #allocation3 [shape = 's32[2]{0}', space=sflag, size = 0x8, scoped, tag = 'scoped memory for tpu_custom_call.1']
    #allocation4 [shape = 'u8[1048576]{0}', space=vmem, size = 0x100000, scoped, tag = 'output window, operand 0']
    %6 = vsyncpa [#allocation3], 0
    %s7 = scalar_lea.sflag [#allocation3], 1
    %8 = vsyncpa %s7, 0
    loop: start=0, step=1, limit=6
    $region2: #{tpu_custom_call.1} parent=1 // loop_pre_header
      _
    $region3: #{tpu_custom_call.1} parent=1 // loop_header
      %s10 = sphi 0, %s14
      %p11 = scmp.ge.s32.totalorder %s10, 6
      %s17 = sphi 0, %s36
      %s18 = sphi 0, %s32
      %s19 = sphi 0, %s28
      %s20 = sphi 0, %s17
      %s21 = sphi 0, %s18
      %s22 = sphi 0, %s19
      %s23 = sphi 0, %s20
      %s24 = sphi 0, %s21
      %s25 = sphi 0, %s22
      %s43 = sphi 0, %s45
      %s46 = sphi 0, %s43
      %s47 = sphi 0, %s46
      %s63 = sphi 0, %s47
      %s73 = sphi 0, %s75
      %s76 = sphi 0, %s73
      %s77 = sphi 0, %s76
      %s93 = sphi 0, %s77
    $region4: #{tpu_custom_call.1} parent=1 // loop_header_branch
      %13 = sbr.rel (%p11) target = $region8
    $region5: #{tpu_custom_call.1} parent=1 // loop_body
      %s15 = ssub.s32 %s10, 1
      %s16 = ssub.s32 %s10, 2
      %s26 = sadd.s32 1, %s19
      %p27 = scmp.ge.s32.totalorder %s26, 1
      %s28 = scalar_select %p27, 0, %s26
      %s29 = sadd.s32 1, %s18
      %s30 = scalar_select %p27, %s29, %s18
      %p31 = scmp.ge.s32.totalorder %s30, 2
      %s32 = scalar_select %p31, 0, %s30
      %s33 = sadd.s32 1, %s17
      %s34 = scalar_select %p31, %s33, %s17
      %p35 = scmp.ge.s32.totalorder %s34, 2
      %s36 = scalar_select %p35, 0, %s34
      %s37 = ssub.s32 %s17, %s36
      %s38 = ssub.s32 %s18, %s32
      %s39 = sor.u32 %s37, %s38
      %s40 = ssub.s32 %s19, %s28
      %s41 = sor.u32 %s39, %s40
      %p42 = scmp.eq.s32.totalorder %s41, 0
      %s44 = sadd.s32 %s43, 1
      %s45 = scalar_select %p42, %s43, %s44
      %p48 = pneg %p42
      %p49 = scmp.eq.s32.totalorder %s10, 3
      %p50 = por %p48, %p49
      %p51 = scmp.ne.s32.totalorder %s43, %s46
      %p52 = scmp.eq.s32.totalorder %s10, 0
      %p53 = por %p51, %p52
      %p54 = scmp.ne.s32.totalorder %s43, %s46
      %p55 = scmp.eq.s32.totalorder %s15, 3
      %p56 = por %p54, %p55
      %p57 = scmp.ne.s32.totalorder %s46, %s47
      %p58 = scmp.eq.s32.totalorder %s15, 0
      %p59 = por %p57, %p58
      %p60 = scmp.ne.s32.totalorder %s46, %s47
      %p61 = scmp.eq.s32.totalorder %s16, 3
      %p62 = por %p60, %p61
      %p64 = scmp.ne.s32.totalorder %s47, %s63
      %p65 = scmp.eq.s32.totalorder %s16, 0
      %p66 = por %p64, %p65
      %s67 = ssub.s32 %s17, %s36
      %s68 = ssub.s32 %s19, %s28
      %s69 = sor.u32 %s67, %s68
      %s70 = ssub.s32 %s18, %s32
      %s71 = sor.u32 %s69, %s70
      %p72 = scmp.eq.s32.totalorder %s71, 0
      %s74 = sadd.s32 %s73, 1
      %s75 = scalar_select %p72, %s73, %s74
      %p78 = pneg %p72
      %p79 = scmp.eq.s32.totalorder %s10, 3
      %p80 = por %p78, %p79
      %p81 = scmp.ne.s32.totalorder %s73, %s76
      %p82 = scmp.eq.s32.totalorder %s10, 0
      %p83 = por %p81, %p82
      %p84 = scmp.ne.s32.totalorder %s73, %s76
      %p85 = scmp.eq.s32.totalorder %s15, 3
      %p86 = por %p84, %p85
      %p87 = scmp.ne.s32.totalorder %s76, %s77
      %p88 = scmp.eq.s32.totalorder %s15, 0
      %p89 = por %p87, %p88
      %p90 = scmp.ne.s32.totalorder %s76, %s77
      %p91 = scmp.eq.s32.totalorder %s16, 3
      %p92 = por %p90, %p91
      %p94 = scmp.ne.s32.totalorder %s77, %s93
      %p95 = scmp.eq.s32.totalorder %s16, 0
      %p96 = por %p94, %p95
      %p97 = scmp.le.s32.totalorder 1, %s10
      %p98 = scmp.lt.s32.totalorder %s10, 5
      %p99 = pnand %p97, %p98
      %p100 = pneg %p99
      // Predicated region
      $region9: #{tpu_custom_call.1} parent=5 // pred_check
        _
      $region10: #{tpu_custom_call.1} parent=5 // pred_check_branch
        %102 = sbr.rel (%p99) target = $region12
      $region11: #{tpu_custom_call.1} parent=5 // pred_region
        %s103 = ssub.s32 %s10, 1
      $region12: #{tpu_custom_call.1} parent=5 // pred_fallthru
        _
      %p104 = scmp.lt.s32.totalorder %s10, 4
      // Predicated region
      $region13: #{tpu_custom_call.1} parent=5 // pred_check
        %p105 = pneg %p104
      $region14: #{tpu_custom_call.1} parent=5 // pred_check_branch
        %107 = sbr.rel (%p105) target = $region16
      $region15: #{tpu_custom_call.1} parent=5 // pred_region
        // Predicated region
        $region17: #{tpu_custom_call.1} parent=15 // pred_check
          %p108 = pneg %p53
        $region18: #{tpu_custom_call.1} parent=15 // pred_check_branch
          %110 = sbr.rel (%p108) target = $region20
        $region19: #{tpu_custom_call.1} parent=15 // pred_region
          %s111 = sand.u32 %s43, 1
          %s112 = scalar_lea.sflag [#allocation3], %s111
          %s113 = sand.u32 %s43, 1
          %s114 = smul.addr %s113, 1024
          %s115 = scalar_lea.vmem [#allocation2], %s114
          %s116 = smul.u32 32, %s18
          %s117 = smul.u32 4, %s19
          %s118 = ssub.s32 33, %s116
          %p119 = scmp.lt.s32.totalorder %s118, 32
          %s120 = scalar_select %p119, %s118, 32
          %s121 = smul.u32 128, %s120
          %s122 = smul.u32 %s121, 4
          %s124 = ssub.s32 16384, %s122
          %125 = vsyncadd %s112, %s124
          %p126 = scmp.ne.s32.totalorder 0, %s122
          %s127 = smul.addr %s116, 4
          %s128 = sadd.s32 %s117, %s127
          %s129 = smul.addr %s17, 132
          %s130 = sadd.s32 %s128, %s129
          %s131 = smul.addr %s130, 128
          %s132 = scalar_lea.hbm %s0, %s131
          %s133 = smul.u32 32, %s120
          %s134 = sshll.u32 %s115, 4
          %s135 = int_to_ptr.vmem [resolvable:$true] %s134
          %s136 = sshll.u32 %s133, 4
          %140 = dma.hbm_to_vmem [thread:$0]  (%p126), %s132, %s136, %s135, %s112, 512, 512, 32
        $region20: #{tpu_custom_call.1} parent=15 // pred_fallthru
          _
      $region16: #{tpu_custom_call.1} parent=5 // pred_fallthru
        _
      %p141 = scmp.le.s32.totalorder 1, %s10
      %p142 = scmp.lt.s32.totalorder %s10, 5
      %p143 = pnand %p141, %p142
      %p144 = pneg %p143
      // Predicated region
      $region21: #{tpu_custom_call.1} parent=5 // pred_check
        _
      $region22: #{tpu_custom_call.1} parent=5 // pred_check_branch
        %146 = sbr.rel (%p143) target = $region24
      $region23: #{tpu_custom_call.1} parent=5 // pred_region
        %s147 = ssub.s32 %s10, 1
        %s148 = sand.u32 %s46, 1
        %s149 = scalar_lea.sflag [#allocation3], %s148
        %s150 = sand.u32 %s46, 1
        %s151 = smul.addr %s150, 1024
        %s152 = scalar_lea.vmem [#allocation2], %s151
        // Predicated region
        $region25: #{tpu_custom_call.1} parent=23 // pred_check
          %p153 = pneg %p59
        $region26: #{tpu_custom_call.1} parent=23 // pred_check_branch
          %155 = sbr.rel (%p153) target = $region28
        $region27: #{tpu_custom_call.1} parent=23 // pred_region
          %156 = dma.done %s149, 16384
        $region28: #{tpu_custom_call.1} parent=23 // pred_fallthru
          _
        %s157 = sand.u32 %s46, 1
        %s158 = scalar_lea.sflag [#allocation3], %s157
        %s159 = sand.u32 %s46, 1
        %s160 = smul.addr %s159, 1024
        %s161 = scalar_lea.vmem [#allocation2], %s160
        %p162 = pneg %p59
        %p163 = pneg %p56
        %p164 = pneg %p89
        %p165 = pneg %p86
        %s166 = sand.u32 %s76, 1
        %s167 = sand.u32 %s76, 1
        %s168 = smul.addr %s167, 1024
        %s169 = scalar_lea.vmem [#allocation4], %s168
        %s170 = smul.u32 32, %s21
        %s171 = smul.u32 4, %s22
        %s172 = ssub.s32 33, %s170
        %p173 = scmp.lt.s32.totalorder %s172, 32
        %s174 = scalar_select %p173, %s172, 32
        %s175 = smul.u32 128, %s174
        %s176 = smul.u32 %s175, 4
        %s177 = smul.u32 64, %s22
        %s178 = smul.u32 2, %s21
        %s179 = ssub.s32 49, %s177
        %s180 = smul.u32 128, %s179
        %s181 = ssub.s32 3, %s178
        %p182 = scmp.lt.s32.totalorder %s181, 2
        %s183 = scalar_select %p182, %s181, 2
        %s184 = smul.u32 %s180, %s183
        %v185 = vld [vmem:[%s152] sm:$0xff]
        %v186 = vld [vmem:[%s152 + $0x8] sm:$0xff]
        %v187 = vld [vmem:[%s152 + $0x10] sm:$0xff]
        %v188 = vld [vmem:[%s152 + $0x18] sm:$0xff]
        %v189 = vld [vmem:[%s152 + $0x20] sm:$0xff]
        %v190 = vld [vmem:[%s152 + $0x28] sm:$0xff]
        %v191 = vld [vmem:[%s152 + $0x30] sm:$0xff]
        %v192 = vld [vmem:[%s152 + $0x38] sm:$0xff]
        %v193 = vld [vmem:[%s152 + $0x40] sm:$0xff]
        %v194 = vld [vmem:[%s152 + $0x48] sm:$0xff]
        %v195 = vld [vmem:[%s152 + $0x50] sm:$0xff]
        %v196 = vld [vmem:[%s152 + $0x58] sm:$0xff]
        %v197 = vld [vmem:[%s152 + $0x60] sm:$0xff]
        %v198 = vld [vmem:[%s152 + $0x68] sm:$0xff]
        %v199 = vld [vmem:[%s152 + $0x70] sm:$0xff]
        %v200 = vld [vmem:[%s152 + $0x78] sm:$0xff]
        %v201 = vld [vmem:[%s152 + $0x80] sm:$0xff]
        %v202 = vld [vmem:[%s152 + $0x88] sm:$0xff]
        %v203 = vld [vmem:[%s152 + $0x90] sm:$0xff]
        %v204 = vld [vmem:[%s152 + $0x98] sm:$0xff]
        %v205 = vld [vmem:[%s152 + $0xa0] sm:$0xff]
        %v206 = vld [vmem:[%s152 + $0xa8] sm:$0xff]
        %v207 = vld [vmem:[%s152 + $0xb0] sm:$0xff]
        %v208 = vld [vmem:[%s152 + $0xb8] sm:$0xff]
        %v209 = vld [vmem:[%s152 + $0xc0] sm:$0xff]
        %v210 = vld [vmem:[%s152 + $0xc8] sm:$0xff]
        %v211 = vld [vmem:[%s152 + $0xd0] sm:$0xff]
        %v212 = vld [vmem:[%s152 + $0xd8] sm:$0xff]
        %v213 = vld [vmem:[%s152 + $0xe0] sm:$0xff]
        %v214 = vld [vmem:[%s152 + $0xe8] sm:$0xff]
        %v215 = vld [vmem:[%s152 + $0xf0] sm:$0xff]
        %v216 = vld [vmem:[%s152 + $0xf8] sm:$0xff]
        %v217 = vld [vmem:[%s152 + $0x100] sm:$0xff]
        %v218 = vld [vmem:[%s152 + $0x108] sm:$0xff]
        %v219 = vld [vmem:[%s152 + $0x110] sm:$0xff]
        %v220 = vld [vmem:[%s152 + $0x118] sm:$0xff]
        %v221 = vld [vmem:[%s152 + $0x120] sm:$0xff]
        %v222 = vld [vmem:[%s152 + $0x128] sm:$0xff]
        %v223 = vld [vmem:[%s152 + $0x130] sm:$0xff]
        %v224 = vld [vmem:[%s152 + $0x138] sm:$0xff]
        %v225 = vld [vmem:[%s152 + $0x140] sm:$0xff]
        %v226 = vld [vmem:[%s152 + $0x148] sm:$0xff]
        %v227 = vld [vmem:[%s152 + $0x150] sm:$0xff]
        %v228 = vld [vmem:[%s152 + $0x158] sm:$0xff]
        %v229 = vld [vmem:[%s152 + $0x160] sm:$0xff]
        %v230 = vld [vmem:[%s152 + $0x168] sm:$0xff]
        %v231 = vld [vmem:[%s152 + $0x170] sm:$0xff]
        %v232 = vld [vmem:[%s152 + $0x178] sm:$0xff]
        %v233 = vld [vmem:[%s152 + $0x180] sm:$0xff]
        %v234 = vld [vmem:[%s152 + $0x188] sm:$0xff]
        %v235 = vld [vmem:[%s152 + $0x190] sm:$0xff]
        %v236 = vld [vmem:[%s152 + $0x198] sm:$0xff]
        %v237 = vld [vmem:[%s152 + $0x1a0] sm:$0xff]
        %v238 = vld [vmem:[%s152 + $0x1a8] sm:$0xff]
        %v239 = vld [vmem:[%s152 + $0x1b0] sm:$0xff]
        %v240 = vld [vmem:[%s152 + $0x1b8] sm:$0xff]
        %v241 = vld [vmem:[%s152 + $0x1c0] sm:$0xff]
        %v242 = vld [vmem:[%s152 + $0x1c8] sm:$0xff]
        %v243 = vld [vmem:[%s152 + $0x1d0] sm:$0xff]
        %v244 = vld [vmem:[%s152 + $0x1d8] sm:$0xff]
        %v245 = vld [vmem:[%s152 + $0x1e0] sm:$0xff]
        %v246 = vld [vmem:[%s152 + $0x1e8] sm:$0xff]
        %v247 = vld [vmem:[%s152 + $0x1f0] sm:$0xff]
        %v248 = vld [vmem:[%s152 + $0x1f8] sm:$0xff]
        %v249 = vld [vmem:[%s152 + $0x200] sm:$0xff]
        %v250 = vld [vmem:[%s152 + $0x208] sm:$0xff]
        %v251 = vld [vmem:[%s152 + $0x210] sm:$0xff]
        %v252 = vld [vmem:[%s152 + $0x218] sm:$0xff]
        %v253 = vld [vmem:[%s152 + $0x220] sm:$0xff]
        %v254 = vld [vmem:[%s152 + $0x228] sm:$0xff]
        %v255 = vld [vmem:[%s152 + $0x230] sm:$0xff]
        %v256 = vld [vmem:[%s152 + $0x238] sm:$0xff]
        %v257 = vld [vmem:[%s152 + $0x240] sm:$0xff]
        %v258 = vld [vmem:[%s152 + $0x248] sm:$0xff]
        %v259 = vld [vmem:[%s152 + $0x250] sm:$0xff]
        %v260 = vld [vmem:[%s152 + $0x258] sm:$0xff]
        %v261 = vld [vmem:[%s152 + $0x260] sm:$0xff]
        %v262 = vld [vmem:[%s152 + $0x268] sm:$0xff]
        %v263 = vld [vmem:[%s152 + $0x270] sm:$0xff]
        %v264 = vld [vmem:[%s152 + $0x278] sm:$0xff]
        %v265 = vld [vmem:[%s152 + $0x280] sm:$0xff]
        %v266 = vld [vmem:[%s152 + $0x288] sm:$0xff]
        %v267 = vld [vmem:[%s152 + $0x290] sm:$0xff]
        %v268 = vld [vmem:[%s152 + $0x298] sm:$0xff]
        %v269 = vld [vmem:[%s152 + $0x2a0] sm:$0xff]
        %v270 = vld [vmem:[%s152 + $0x2a8] sm:$0xff]
        %v271 = vld [vmem:[%s152 + $0x2b0] sm:$0xff]
        %v272 = vld [vmem:[%s152 + $0x2b8] sm:$0xff]
        %v273 = vld [vmem:[%s152 + $0x2c0] sm:$0xff]
        %v274 = vld [vmem:[%s152 + $0x2c8] sm:$0xff]
        %v275 = vld [vmem:[%s152 + $0x2d0] sm:$0xff]
        %v276 = vld [vmem:[%s152 + $0x2d8] sm:$0xff]
        %v277 = vld [vmem:[%s152 + $0x2e0] sm:$0xff]
        %v278 = vld [vmem:[%s152 + $0x2e8] sm:$0xff]
        %v279 = vld [vmem:[%s152 + $0x2f0] sm:$0xff]
        %v280 = vld [vmem:[%s152 + $0x2f8] sm:$0xff]
        %v281 = vld [vmem:[%s152 + $0x300] sm:$0xff]
        %v282 = vld [vmem:[%s152 + $0x308] sm:$0xff]
        %v283 = vld [vmem:[%s152 + $0x310] sm:$0xff]
        %v284 = vld [vmem:[%s152 + $0x318] sm:$0xff]
        %v285 = vld [vmem:[%s152 + $0x320] sm:$0xff]
        %v286 = vld [vmem:[%s152 + $0x328] sm:$0xff]
        %v287 = vld [vmem:[%s152 + $0x330] sm:$0xff]
        %v288 = vld [vmem:[%s152 + $0x338] sm:$0xff]
        %v289 = vld [vmem:[%s152 + $0x340] sm:$0xff]
        %v290 = vld [vmem:[%s152 + $0x348] sm:$0xff]
        %v291 = vld [vmem:[%s152 + $0x350] sm:$0xff]
        %v292 = vld [vmem:[%s152 + $0x358] sm:$0xff]
        %v293 = vld [vmem:[%s152 + $0x360] sm:$0xff]
        %v294 = vld [vmem:[%s152 + $0x368] sm:$0xff]
        %v295 = vld [vmem:[%s152 + $0x370] sm:$0xff]
        %v296 = vld [vmem:[%s152 + $0x378] sm:$0xff]
        %v297 = vld [vmem:[%s152 + $0x380] sm:$0xff]
        %v298 = vld [vmem:[%s152 + $0x388] sm:$0xff]
        %v299 = vld [vmem:[%s152 + $0x390] sm:$0xff]
        %v300 = vld [vmem:[%s152 + $0x398] sm:$0xff]
        %v301 = vld [vmem:[%s152 + $0x3a0] sm:$0xff]
        %v302 = vld [vmem:[%s152 + $0x3a8] sm:$0xff]
        %v303 = vld [vmem:[%s152 + $0x3b0] sm:$0xff]
        %v304 = vld [vmem:[%s152 + $0x3b8] sm:$0xff]
        %v305 = vld [vmem:[%s152 + $0x3c0] sm:$0xff]
        %v306 = vld [vmem:[%s152 + $0x3c8] sm:$0xff]
        %v307 = vld [vmem:[%s152 + $0x3d0] sm:$0xff]
        %v308 = vld [vmem:[%s152 + $0x3d8] sm:$0xff]
        %v309 = vld [vmem:[%s152 + $0x3e0] sm:$0xff]
        %v310 = vld [vmem:[%s152 + $0x3e8] sm:$0xff]
        %v311 = vld [vmem:[%s152 + $0x3f0] sm:$0xff]
        %v312 = vld [vmem:[%s152 + $0x3f8] sm:$0xff]
        %313 = vxpose.xlu0.b32.start [1/16] %v185, 128
        %314 = vxpose.xlu0.b32.cont [2/16] %v189, 128
        %315 = vxpose.xlu0.b32.cont [3/16] %v193, 128
        %316 = vxpose.xlu0.b32.cont [4/16] %v197, 128
        %317 = vxpose.xlu0.b32.cont [5/16] %v201, 128
        %318 = vxpose.xlu0.b32.cont [6/16] %v205, 128
        %319 = vxpose.xlu0.b32.cont [7/16] %v209, 128
        %320 = vxpose.xlu0.b32.cont [8/16] %v213, 128
        %321 = vxpose.xlu0.b32.cont [9/16] %v217, 128
        %322 = vxpose.xlu0.b32.cont [10/16] %v221, 128
        %323 = vxpose.xlu0.b32.cont [11/16] %v225, 128
        %324 = vxpose.xlu0.b32.cont [12/16] %v229, 128
        %325 = vxpose.xlu0.b32.cont [13/16] %v233, 128
        %326 = vxpose.xlu0.b32.cont [14/16] %v237, 128
        %327 = vxpose.xlu0.b32.cont [15/16] %v241, 128
        %328 = vxpose.xlu0.b32.end [16/16] %v245, 128
        %v329 = vpop.trf.xlu0
        %v330 = vpop.trf.xlu0
        %v331 = vpop.trf.xlu0
        %v332 = vpop.trf.xlu0
        %v333 = vpop.trf.xlu0
        %v334 = vpop.trf.xlu0
        %v335 = vpop.trf.xlu0
        %v336 = vpop.trf.xlu0
        %v337 = vpop.trf.xlu0
        %v338 = vpop.trf.xlu0
        %v339 = vpop.trf.xlu0
        %v340 = vpop.trf.xlu0
        %v341 = vpop.trf.xlu0
        %v342 = vpop.trf.xlu0
        %v343 = vpop.trf.xlu0
        %v344 = vpop.trf.xlu0
        %345 = vxpose.xlu0.b32.start [1/16] %v186, 128
        %346 = vxpose.xlu0.b32.cont [2/16] %v190, 128
        %347 = vxpose.xlu0.b32.cont [3/16] %v194, 128
        %348 = vxpose.xlu0.b32.cont [4/16] %v198, 128
        %349 = vxpose.xlu0.b32.cont [5/16] %v202, 128
        %350 = vxpose.xlu0.b32.cont [6/16] %v206, 128
        %351 = vxpose.xlu0.b32.cont [7/16] %v210, 128
        %352 = vxpose.xlu0.b32.cont [8/16] %v214, 128
        %353 = vxpose.xlu0.b32.cont [9/16] %v218, 128
        %354 = vxpose.xlu0.b32.cont [10/16] %v222, 128
        %355 = vxpose.xlu0.b32.cont [11/16] %v226, 128
        %356 = vxpose.xlu0.b32.cont [12/16] %v230, 128
        %357 = vxpose.xlu0.b32.cont [13/16] %v234, 128
        %358 = vxpose.xlu0.b32.cont [14/16] %v238, 128
        %359 = vxpose.xlu0.b32.cont [15/16] %v242, 128
        %360 = vxpose.xlu0.b32.end [16/16] %v246, 128
        %v361 = vpop.trf.xlu0
        %v362 = vpop.trf.xlu0
        %v363 = vpop.trf.xlu0
        %v364 = vpop.trf.xlu0
        %v365 = vpop.trf.xlu0
        %v366 = vpop.trf.xlu0
        %v367 = vpop.trf.xlu0
        %v368 = vpop.trf.xlu0
        %v369 = vpop.trf.xlu0
        %v370 = vpop.trf.xlu0
        %v371 = vpop.trf.xlu0
        %v372 = vpop.trf.xlu0
        %v373 = vpop.trf.xlu0
        %v374 = vpop.trf.xlu0
        %v375 = vpop.trf.xlu0
        %v376 = vpop.trf.xlu0
        %377 = vxpose.xlu0.b32.start [1/16] %v187, 128
        %378 = vxpose.xlu0.b32.cont [2/16] %v191, 128
        %379 = vxpose.xlu0.b32.cont [3/16] %v195, 128
        %380 = vxpose.xlu0.b32.cont [4/16] %v199, 128
        %381 = vxpose.xlu0.b32.cont [5/16] %v203, 128
        %382 = vxpose.xlu0.b32.cont [6/16] %v207, 128
        %383 = vxpose.xlu0.b32.cont [7/16] %v211, 128
        %384 = vxpose.xlu0.b32.cont [8/16] %v215, 128
        %385 = vxpose.xlu0.b32.cont [9/16] %v219, 128
        %386 = vxpose.xlu0.b32.cont [10/16] %v223, 128
        %387 = vxpose.xlu0.b32.cont [11/16] %v227, 128
        %388 = vxpose.xlu0.b32.cont [12/16] %v231, 128
        %389 = vxpose.xlu0.b32.cont [13/16] %v235, 128
        %390 = vxpose.xlu0.b32.cont [14/16] %v239, 128
        %391 = vxpose.xlu0.b32.cont [15/16] %v243, 128
        %392 = vxpose.xlu0.b32.end [16/16] %v247, 128
        %v393 = vpop.trf.xlu0
        %v394 = vpop.trf.xlu0
        %v395 = vpop.trf.xlu0
        %v396 = vpop.trf.xlu0
        %v397 = vpop.trf.xlu0
        %v398 = vpop.trf.xlu0
        %v399 = vpop.trf.xlu0
        %v400 = vpop.trf.xlu0
        %v401 = vpop.trf.xlu0
        %v402 = vpop.trf.xlu0
        %v403 = vpop.trf.xlu0
        %v404 = vpop.trf.xlu0
        %v405 = vpop.trf.xlu0
        %v406 = vpop.trf.xlu0
        %v407 = vpop.trf.xlu0
        %v408 = vpop.trf.xlu0
        %409 = vxpose.xlu0.b32.start [1/16] %v188, 128
        %410 = vxpose.xlu0.b32.cont [2/16] %v192, 128
        %411 = vxpose.xlu0.b32.cont [3/16] %v196, 128
        %412 = vxpose.xlu0.b32.cont [4/16] %v200, 128
        %413 = vxpose.xlu0.b32.cont [5/16] %v204, 128
        %414 = vxpose.xlu0.b32.cont [6/16] %v208, 128
        %415 = vxpose.xlu0.b32.cont [7/16] %v212, 128
        %416 = vxpose.xlu0.b32.cont [8/16] %v216, 128
        %417 = vxpose.xlu0.b32.cont [9/16] %v220, 128
        %418 = vxpose.xlu0.b32.cont [10/16] %v224, 128
        %419 = vxpose.xlu0.b32.cont [11/16] %v228, 128
        %420 = vxpose.xlu0.b32.cont [12/16] %v232, 128
        %421 = vxpose.xlu0.b32.cont [13/16] %v236, 128
        %422 = vxpose.xlu0.b32.cont [14/16] %v240, 128
        %423 = vxpose.xlu0.b32.cont [15/16] %v244, 128
        %424 = vxpose.xlu0.b32.end [16/16] %v248, 128
        %v425 = vpop.trf.xlu0
        %v426 = vpop.trf.xlu0
        %v427 = vpop.trf.xlu0
        %v428 = vpop.trf.xlu0
        %v429 = vpop.trf.xlu0
        %v430 = vpop.trf.xlu0
        %v431 = vpop.trf.xlu0
        %v432 = vpop.trf.xlu0
        %v433 = vpop.trf.xlu0
        %v434 = vpop.trf.xlu0
        %v435 = vpop.trf.xlu0
        %v436 = vpop.trf.xlu0
        %v437 = vpop.trf.xlu0
        %v438 = vpop.trf.xlu0
        %v439 = vpop.trf.xlu0
        %v440 = vpop.trf.xlu0
        %441 = vxpose.xlu0.b32.start [1/16] %v249, 128
        %442 = vxpose.xlu0.b32.cont [2/16] %v253, 128
        %443 = vxpose.xlu0.b32.cont [3/16] %v257, 128
        %444 = vxpose.xlu0.b32.cont [4/16] %v261, 128
        %445 = vxpose.xlu0.b32.cont [5/16] %v265, 128
        %446 = vxpose.xlu0.b32.cont [6/16] %v269, 128
        %447 = vxpose.xlu0.b32.cont [7/16] %v273, 128
        %448 = vxpose.xlu0.b32.cont [8/16] %v277, 128
        %449 = vxpose.xlu0.b32.cont [9/16] %v281, 128
        %450 = vxpose.xlu0.b32.cont [10/16] %v285, 128
        %451 = vxpose.xlu0.b32.cont [11/16] %v289, 128
        %452 = vxpose.xlu0.b32.cont [12/16] %v293, 128
        %453 = vxpose.xlu0.b32.cont [13/16] %v297, 128
        %454 = vxpose.xlu0.b32.cont [14/16] %v301, 128
        %455 = vxpose.xlu0.b32.cont [15/16] %v305, 128
        %456 = vxpose.xlu0.b32.end [16/16] %v309, 128
        %v457 = vpop.trf.xlu0
        %v458 = vpop.trf.xlu0
        %v459 = vpop.trf.xlu0
        %v460 = vpop.trf.xlu0
        %v461 = vpop.trf.xlu0
        %v462 = vpop.trf.xlu0
        %v463 = vpop.trf.xlu0
        %v464 = vpop.trf.xlu0
        %v465 = vpop.trf.xlu0
        %v466 = vpop.trf.xlu0
        %v467 = vpop.trf.xlu0
        %v468 = vpop.trf.xlu0
        %v469 = vpop.trf.xlu0
        %v470 = vpop.trf.xlu0
        %v471 = vpop.trf.xlu0
        %v472 = vpop.trf.xlu0
        %473 = vxpose.xlu0.b32.start [1/16] %v250, 128
        %474 = vxpose.xlu0.b32.cont [2/16] %v254, 128
        %475 = vxpose.xlu0.b32.cont [3/16] %v258, 128
        %476 = vxpose.xlu0.b32.cont [4/16] %v262, 128
        %477 = vxpose.xlu0.b32.cont [5/16] %v266, 128
        %478 = vxpose.xlu0.b32.cont [6/16] %v270, 128
        %479 = vxpose.xlu0.b32.cont [7/16] %v274, 128
        %480 = vxpose.xlu0.b32.cont [8/16] %v278, 128
        %481 = vxpose.xlu0.b32.cont [9/16] %v282, 128
        %482 = vxpose.xlu0.b32.cont [10/16] %v286, 128
        %483 = vxpose.xlu0.b32.cont [11/16] %v290, 128
        %484 = vxpose.xlu0.b32.cont [12/16] %v294, 128
        %485 = vxpose.xlu0.b32.cont [13/16] %v298, 128
        %486 = vxpose.xlu0.b32.cont [14/16] %v302, 128
        %487 = vxpose.xlu0.b32.cont [15/16] %v306, 128
        %488 = vxpose.xlu0.b32.end [16/16] %v310, 128
        %v489 = vpop.trf.xlu0
        %v490 = vpop.trf.xlu0
        %v491 = vpop.trf.xlu0
        %v492 = vpop.trf.xlu0
        %v493 = vpop.trf.xlu0
        %v494 = vpop.trf.xlu0
        %v495 = vpop.trf.xlu0
        %v496 = vpop.trf.xlu0
        %v497 = vpop.trf.xlu0
        %v498 = vpop.trf.xlu0
        %v499 = vpop.trf.xlu0
        %v500 = vpop.trf.xlu0
        %v501 = vpop.trf.xlu0
        %v502 = vpop.trf.xlu0
        %v503 = vpop.trf.xlu0
        %v504 = vpop.trf.xlu0
        %505 = vxpose.xlu0.b32.start [1/16] %v251, 128
        %506 = vxpose.xlu0.b32.cont [2/16] %v255, 128
        %507 = vxpose.xlu0.b32.cont [3/16] %v259, 128
        %508 = vxpose.xlu0.b32.cont [4/16] %v263, 128
        %509 = vxpose.xlu0.b32.cont [5/16] %v267, 128
        %510 = vxpose.xlu0.b32.cont [6/16] %v271, 128
        %511 = vxpose.xlu0.b32.cont [7/16] %v275, 128
        %512 = vxpose.xlu0.b32.cont [8/16] %v279, 128
        %513 = vxpose.xlu0.b32.cont [9/16] %v283, 128
        %514 = vxpose.xlu0.b32.cont [10/16] %v287, 128
        %515 = vxpose.xlu0.b32.cont [11/16] %v291, 128
        %516 = vxpose.xlu0.b32.cont [12/16] %v295, 128
        %517 = vxpose.xlu0.b32.cont [13/16] %v299, 128
        %518 = vxpose.xlu0.b32.cont [14/16] %v303, 128
        %519 = vxpose.xlu0.b32.cont [15/16] %v307, 128
        %520 = vxpose.xlu0.b32.end [16/16] %v311, 128
        %v521 = vpop.trf.xlu0
        %v522 = vpop.trf.xlu0
        %v523 = vpop.trf.xlu0
        %v524 = vpop.trf.xlu0
        %v525 = vpop.trf.xlu0
        %v526 = vpop.trf.xlu0
        %v527 = vpop.trf.xlu0
        %v528 = vpop.trf.xlu0
        %v529 = vpop.trf.xlu0
        %v530 = vpop.trf.xlu0
        %v531 = vpop.trf.xlu0
        %v532 = vpop.trf.xlu0
        %v533 = vpop.trf.xlu0
        %v534 = vpop.trf.xlu0
        %v535 = vpop.trf.xlu0
        %v536 = vpop.trf.xlu0
        %537 = vxpose.xlu0.b32.start [1/16] %v252, 128
        %538 = vxpose.xlu0.b32.cont [2/16] %v256, 128
        %539 = vxpose.xlu0.b32.cont [3/16] %v260, 128
        %540 = vxpose.xlu0.b32.cont [4/16] %v264, 128
        %541 = vxpose.xlu0.b32.cont [5/16] %v268, 128
        %542 = vxpose.xlu0.b32.cont [6/16] %v272, 128
        %543 = vxpose.xlu0.b32.cont [7/16] %v276, 128
        %544 = vxpose.xlu0.b32.cont [8/16] %v280, 128
        %545 = vxpose.xlu0.b32.cont [9/16] %v284, 128
        %546 = vxpose.xlu0.b32.cont [10/16] %v288, 128
        %547 = vxpose.xlu0.b32.cont [11/16] %v292, 128
        %548 = vxpose.xlu0.b32.cont [12/16] %v296, 128
        %549 = vxpose.xlu0.b32.cont [13/16] %v300, 128
        %550 = vxpose.xlu0.b32.cont [14/16] %v304, 128
        %551 = vxpose.xlu0.b32.cont [15/16] %v308, 128
        %552 = vxpose.xlu0.b32.end [16/16] %v312, 128
        %v553 = vpop.trf.xlu0
        %v554 = vpop.trf.xlu0
        %v555 = vpop.trf.xlu0
        %v556 = vpop.trf.xlu0
        %v557 = vpop.trf.xlu0
        %v558 = vpop.trf.xlu0
        %v559 = vpop.trf.xlu0
        %v560 = vpop.trf.xlu0
        %v561 = vpop.trf.xlu0
        %v562 = vpop.trf.xlu0
        %v563 = vpop.trf.xlu0
        %v564 = vpop.trf.xlu0
        %v565 = vpop.trf.xlu0
        %v566 = vpop.trf.xlu0
        %v567 = vpop.trf.xlu0
        %v568 = vpop.trf.xlu0
        %569 = vst [vmem:[%s169] sm:$0xff] %v329
        %570 = vst [vmem:[%s169 + $0x8] sm:$0xff] %v457
        %571 = vst [vmem:[%s169 + $0x10] sm:$0xff] %v330
        %572 = vst [vmem:[%s169 + $0x18] sm:$0xff] %v458
        %573 = vst [vmem:[%s169 + $0x20] sm:$0xff] %v331
        %574 = vst [vmem:[%s169 + $0x28] sm:$0xff] %v459
        %575 = vst [vmem:[%s169 + $0x30] sm:$0xff] %v332
        %576 = vst [vmem:[%s169 + $0x38] sm:$0xff] %v460
        %577 = vst [vmem:[%s169 + $0x40] sm:$0xff] %v333
        %578 = vst [vmem:[%s169 + $0x48] sm:$0xff] %v461
        %579 = vst [vmem:[%s169 + $0x50] sm:$0xff] %v334
        %580 = vst [vmem:[%s169 + $0x58] sm:$0xff] %v462
        %581 = vst [vmem:[%s169 + $0x60] sm:$0xff] %v335
        %582 = vst [vmem:[%s169 + $0x68] sm:$0xff] %v463
        %583 = vst [vmem:[%s169 + $0x70] sm:$0xff] %v336
        %584 = vst [vmem:[%s169 + $0x78] sm:$0xff] %v464
        %585 = vst [vmem:[%s169 + $0x80] sm:$0xff] %v337
        %586 = vst [vmem:[%s169 + $0x88] sm:$0xff] %v465
        %587 = vst [vmem:[%s169 + $0x90] sm:$0xff] %v338
        %588 = vst [vmem:[%s169 + $0x98] sm:$0xff] %v466
        %589 = vst [vmem:[%s169 + $0xa0] sm:$0xff] %v339
        %590 = vst [vmem:[%s169 + $0xa8] sm:$0xff] %v467
        %591 = vst [vmem:[%s169 + $0xb0] sm:$0xff] %v340
        %592 = vst [vmem:[%s169 + $0xb8] sm:$0xff] %v468
        %593 = vst [vmem:[%s169 + $0xc0] sm:$0xff] %v341
        %594 = vst [vmem:[%s169 + $0xc8] sm:$0xff] %v469
        %595 = vst [vmem:[%s169 + $0xd0] sm:$0xff] %v342
        %596 = vst [vmem:[%s169 + $0xd8] sm:$0xff] %v470
        %597 = vst [vmem:[%s169 + $0xe0] sm:$0xff] %v343
        %598 = vst [vmem:[%s169 + $0xe8] sm:$0xff] %v471
        %599 = vst [vmem:[%s169 + $0xf0] sm:$0xff] %v344
        %600 = vst [vmem:[%s169 + $0xf8] sm:$0xff] %v472
        %601 = vst [vmem:[%s169 + $0x100] sm:$0xff] %v361
        %602 = vst [vmem:[%s169 + $0x108] sm:$0xff] %v489
        %603 = vst [vmem:[%s169 + $0x110] sm:$0xff] %v362
        %604 = vst [vmem:[%s169 + $0x118] sm:$0xff] %v490
        %605 = vst [vmem:[%s169 + $0x120] sm:$0xff] %v363
        %606 = vst [vmem:[%s169 + $0x128] sm:$0xff] %v491
        %607 = vst [vmem:[%s169 + $0x130] sm:$0xff] %v364
        %608 = vst [vmem:[%s169 + $0x138] sm:$0xff] %v492
        %609 = vst [vmem:[%s169 + $0x140] sm:$0xff] %v365
        %610 = vst [vmem:[%s169 + $0x148] sm:$0xff] %v493
        %611 = vst [vmem:[%s169 + $0x150] sm:$0xff] %v366
        %612 = vst [vmem:[%s169 + $0x158] sm:$0xff] %v494
        %613 = vst [vmem:[%s169 + $0x160] sm:$0xff] %v367
        %614 = vst [vmem:[%s169 + $0x168] sm:$0xff] %v495
        %615 = vst [vmem:[%s169 + $0x170] sm:$0xff] %v368
        %616 = vst [vmem:[%s169 + $0x178] sm:$0xff] %v496
        %617 = vst [vmem:[%s169 + $0x180] sm:$0xff] %v369
        %618 = vst [vmem:[%s169 + $0x188] sm:$0xff] %v497
        %619 = vst [vmem:[%s169 + $0x190] sm:$0xff] %v370
        %620 = vst [vmem:[%s169 + $0x198] sm:$0xff] %v498
        %621 = vst [vmem:[%s169 + $0x1a0] sm:$0xff] %v371
        %622 = vst [vmem:[%s169 + $0x1a8] sm:$0xff] %v499
        %623 = vst [vmem:[%s169 + $0x1b0] sm:$0xff] %v372
        %624 = vst [vmem:[%s169 + $0x1b8] sm:$0xff] %v500
        %625 = vst [vmem:[%s169 + $0x1c0] sm:$0xff] %v373
        %626 = vst [vmem:[%s169 + $0x1c8] sm:$0xff] %v501
        %627 = vst [vmem:[%s169 + $0x1d0] sm:$0xff] %v374
        %628 = vst [vmem:[%s169 + $0x1d8] sm:$0xff] %v502
        %629 = vst [vmem:[%s169 + $0x1e0] sm:$0xff] %v375
        %630 = vst [vmem:[%s169 + $0x1e8] sm:$0xff] %v503
        %631 = vst [vmem:[%s169 + $0x1f0] sm:$0xff] %v376
        %632 = vst [vmem:[%s169 + $0x1f8] sm:$0xff] %v504
        %633 = vst [vmem:[%s169 + $0x200] sm:$0xff] %v393
        %634 = vst [vmem:[%s169 + $0x208] sm:$0xff] %v521
        %635 = vst [vmem:[%s169 + $0x210] sm:$0xff] %v394
        %636 = vst [vmem:[%s169 + $0x218] sm:$0xff] %v522
        %637 = vst [vmem:[%s169 + $0x220] sm:$0xff] %v395
        %638 = vst [vmem:[%s169 + $0x228] sm:$0xff] %v523
        %639 = vst [vmem:[%s169 + $0x230] sm:$0xff] %v396
        %640 = vst [vmem:[%s169 + $0x238] sm:$0xff] %v524
        %641 = vst [vmem:[%s169 + $0x240] sm:$0xff] %v397
        %642 = vst [vmem:[%s169 + $0x248] sm:$0xff] %v525
        %643 = vst [vmem:[%s169 + $0x250] sm:$0xff] %v398
        %644 = vst [vmem:[%s169 + $0x258] sm:$0xff] %v526
        %645 = vst [vmem:[%s169 + $0x260] sm:$0xff] %v399
        %646 = vst [vmem:[%s169 + $0x268] sm:$0xff] %v527
        %647 = vst [vmem:[%s169 + $0x270] sm:$0xff] %v400
        %648 = vst [vmem:[%s169 + $0x278] sm:$0xff] %v528
        %649 = vst [vmem:[%s169 + $0x280] sm:$0xff] %v401
        %650 = vst [vmem:[%s169 + $0x288] sm:$0xff] %v529
        %651 = vst [vmem:[%s169 + $0x290] sm:$0xff] %v402
        %652 = vst [vmem:[%s169 + $0x298] sm:$0xff] %v530
        %653 = vst [vmem:[%s169 + $0x2a0] sm:$0xff] %v403
        %654 = vst [vmem:[%s169 + $0x2a8] sm:$0xff] %v531
        %655 = vst [vmem:[%s169 + $0x2b0] sm:$0xff] %v404
        %656 = vst [vmem:[%s169 + $0x2b8] sm:$0xff] %v532
        %657 = vst [vmem:[%s169 + $0x2c0] sm:$0xff] %v405
        %658 = vst [vmem:[%s169 + $0x2c8] sm:$0xff] %v533
        %659 = vst [vmem:[%s169 + $0x2d0] sm:$0xff] %v406
        %660 = vst [vmem:[%s169 + $0x2d8] sm:$0xff] %v534
        %661 = vst [vmem:[%s169 + $0x2e0] sm:$0xff] %v407
        %662 = vst [vmem:[%s169 + $0x2e8] sm:$0xff] %v535
        %663 = vst [vmem:[%s169 + $0x2f0] sm:$0xff] %v408
        %664 = vst [vmem:[%s169 + $0x2f8] sm:$0xff] %v536
        %665 = vst [vmem:[%s169 + $0x300] sm:$0xff] %v425
        %666 = vst [vmem:[%s169 + $0x308] sm:$0xff] %v553
        %667 = vst [vmem:[%s169 + $0x310] sm:$0xff] %v426
        %668 = vst [vmem:[%s169 + $0x318] sm:$0xff] %v554
        %669 = vst [vmem:[%s169 + $0x320] sm:$0xff] %v427
        %670 = vst [vmem:[%s169 + $0x328] sm:$0xff] %v555
        %671 = vst [vmem:[%s169 + $0x330] sm:$0xff] %v428
        %672 = vst [vmem:[%s169 + $0x338] sm:$0xff] %v556
        %673 = vst [vmem:[%s169 + $0x340] sm:$0xff] %v429
        %674 = vst [vmem:[%s169 + $0x348] sm:$0xff] %v557
        %675 = vst [vmem:[%s169 + $0x350] sm:$0xff] %v430
        %676 = vst [vmem:[%s169 + $0x358] sm:$0xff] %v558
        %677 = vst [vmem:[%s169 + $0x360] sm:$0xff] %v431
        %678 = vst [vmem:[%s169 + $0x368] sm:$0xff] %v559
        %679 = vst [vmem:[%s169 + $0x370] sm:$0xff] %v432
        %680 = vst [vmem:[%s169 + $0x378] sm:$0xff] %v560
        %681 = vst [vmem:[%s169 + $0x380] sm:$0xff] %v433
        %682 = vst [vmem:[%s169 + $0x388] sm:$0xff] %v561
        %683 = vst [vmem:[%s169 + $0x390] sm:$0xff] %v434
        %684 = vst [vmem:[%s169 + $0x398] sm:$0xff] %v562
        %685 = vst [vmem:[%s169 + $0x3a0] sm:$0xff] %v435
        %686 = vst [vmem:[%s169 + $0x3a8] sm:$0xff] %v563
        %687 = vst [vmem:[%s169 + $0x3b0] sm:$0xff] %v436
        %688 = vst [vmem:[%s169 + $0x3b8] sm:$0xff] %v564
        %689 = vst [vmem:[%s169 + $0x3c0] sm:$0xff] %v437
        %690 = vst [vmem:[%s169 + $0x3c8] sm:$0xff] %v565
        %691 = vst [vmem:[%s169 + $0x3d0] sm:$0xff] %v438
        %692 = vst [vmem:[%s169 + $0x3d8] sm:$0xff] %v566
        %693 = vst [vmem:[%s169 + $0x3e0] sm:$0xff] %v439
        %694 = vst [vmem:[%s169 + $0x3e8] sm:$0xff] %v567
        %695 = vst [vmem:[%s169 + $0x3f0] sm:$0xff] %v440
        %696 = vst [vmem:[%s169 + $0x3f8] sm:$0xff] %v568
        %s697 = sand.u32 %s76, 1
        %s698 = sand.u32 %s76, 1
        %s699 = smul.addr %s698, 1024
        %s700 = scalar_lea.vmem [#allocation4], %s699
        // Predicated region
        $region29: #{tpu_custom_call.1} parent=23 // pred_check
          %p701 = pneg %p86
        $region30: #{tpu_custom_call.1} parent=23 // pred_check_branch
          %703 = sbr.rel (%p701) target = $region32
        $region31: #{tpu_custom_call.1} parent=23 // pred_region
          %s704 = smul.u32 64, %s22
          %s705 = smul.u32 2, %s21
          %s706 = ssub.s32 49, %s704
          %s707 = smul.u32 128, %s706
          %s708 = ssub.s32 3, %s705
          %p709 = scmp.lt.s32.totalorder %s708, 2
          %s710 = scalar_select %p709, %s708, 2
          %s711 = smul.u32 %s707, %s710
          %p712 = scmp.ne.s32.totalorder 0, %s711
          %s713 = smul.addr %s704, 3
          %s714 = sadd.s32 %s705, %s713
          %s715 = smul.addr %s20, 147
          %s716 = sadd.s32 %s714, %s715
          %s717 = smul.addr %s716, 8
          %s718 = scalar_lea.vmem %s1, %s717
          %s719 = smul.u32 %s710, 8
          // Predicated region
          $region33: #{tpu_custom_call.1} parent=31 // pred_check
            %p720 = pneg %p712
          $region34: #{tpu_custom_call.1} parent=31 // pred_check_branch
            %722 = sbr.rel (%p720) target = $region36
          $region35: #{tpu_custom_call.1} parent=31 // pred_region
            %p723 = scmp.lt.u32.totalorder %s719, 8
            %p724 = pneg %p723
            // Predicated region
            $region37: #{tpu_custom_call.1} parent=35 // pred_check
              _
            $region38: #{tpu_custom_call.1} parent=35 // pred_check_branch
              %726 = sbr.rel (%p723) target = $region40
            $region39: #{tpu_custom_call.1} parent=35 // pred_region
              %s872 = sand.u32 %s719, 7
              %p873 = scmp.eq.s32.totalorder %s872, 0
              // Predicated region
              $region59: #{tpu_custom_call.1} parent=39 // pred_check
                %p874 = pneg %p873
              $region60: #{tpu_custom_call.1} parent=39 // pred_check_branch
                %876 = sbr.rel (%p874) target = $region62
              $region61: #{tpu_custom_call.1} parent=39 // pred_region
                %s877 = sshrl.u32 %s719, 3
                %s878 = sshrl.u32 %s706, 4
                %s879 = sshrl.u32 %s877, 2
                %s880 = smul.u32 %s878, %s879
                // While loop
                $region63: #{tpu_custom_call.1} parent=61 // loop_pre_header
                  _
                $region64: #{tpu_custom_call.1} parent=61 // loop_header
                  %s884 = sphi 0, %s886
                  %p885 = scmp.ge.s32.totalorder %s884, %s880
                  %s889 = sphi 0, %s1027
                  %s890 = sphi 0, %s1023
                  %s891 = sphi %s700, %s1034
                  %s892 = sphi %s718, %s1035
                $region65: #{tpu_custom_call.1} parent=61 // loop_header_branch
                  %888 = sbr.rel (%p885) target = $region69
                $region66: #{tpu_custom_call.1} parent=61 // loop_body
                  %v893 = vld [vmem:[%s891] sm:$0xff]
                  %894 = vst [vmem:[%s892] sm:$0xff] %v893
                  %v895 = vld [vmem:[%s891 + $0x8] sm:$0xff]
                  %896 = vst [vmem:[%s892 + $0x8] sm:$0xff] %v895
                  %v897 = vld [vmem:[%s891 + $0x10] sm:$0xff]
                  %898 = vst [vmem:[%s892 + $0x10] sm:$0xff] %v897
                  %v899 = vld [vmem:[%s891 + $0x18] sm:$0xff]
                  %900 = vst [vmem:[%s892 + $0x18] sm:$0xff] %v899
                  %v901 = vld [vmem:[%s891 + $0x10] sm:$0xff]
                  %902 = vst [vmem:[%s892 + $0x18] sm:$0xff] %v901
                  %v903 = vld [vmem:[%s891 + $0x18] sm:$0xff]
                  %904 = vst [vmem:[%s892 + $0x20] sm:$0xff] %v903
                  %v905 = vld [vmem:[%s891 + $0x20] sm:$0xff]
                  %906 = vst [vmem:[%s892 + $0x28] sm:$0xff] %v905
                  %v907 = vld [vmem:[%s891 + $0x28] sm:$0xff]
                  %908 = vst [vmem:[%s892 + $0x30] sm:$0xff] %v907
                  %v909 = vld [vmem:[%s891 + $0x20] sm:$0xff]
                  %910 = vst [vmem:[%s892 + $0x30] sm:$0xff] %v909
                  %v911 = vld [vmem:[%s891 + $0x28] sm:$0xff]
                  %912 = vst [vmem:[%s892 + $0x38] sm:$0xff] %v911
                  %v913 = vld [vmem:[%s891 + $0x30] sm:$0xff]
                  %914 = vst [vmem:[%s892 + $0x40] sm:$0xff] %v913
                  %v915 = vld [vmem:[%s891 + $0x38] sm:$0xff]
                  %916 = vst [vmem:[%s892 + $0x48] sm:$0xff] %v915
                  %v917 = vld [vmem:[%s891 + $0x30] sm:$0xff]
                  %918 = vst [vmem:[%s892 + $0x48] sm:$0xff] %v917
                  %v919 = vld [vmem:[%s891 + $0x38] sm:$0xff]
                  %920 = vst [vmem:[%s892 + $0x50] sm:$0xff] %v919
                  %v921 = vld [vmem:[%s891 + $0x40] sm:$0xff]
                  %922 = vst [vmem:[%s892 + $0x58] sm:$0xff] %v921
                  %v923 = vld [vmem:[%s891 + $0x48] sm:$0xff]
                  %924 = vst [vmem:[%s892 + $0x60] sm:$0xff] %v923
                  %v925 = vld [vmem:[%s891 + $0x40] sm:$0xff]
                  %926 = vst [vmem:[%s892 + $0x60] sm:$0xff] %v925
                  %v927 = vld [vmem:[%s891 + $0x48] sm:$0xff]
                  %928 = vst [vmem:[%s892 + $0x68] sm:$0xff] %v927
                  %v929 = vld [vmem:[%s891 + $0x50] sm:$0xff]
                  %930 = vst [vmem:[%s892 + $0x70] sm:$0xff] %v929
                  %v931 = vld [vmem:[%s891 + $0x58] sm:$0xff]
                  %932 = vst [vmem:[%s892 + $0x78] sm:$0xff] %v931
                  %v933 = vld [vmem:[%s891 + $0x50] sm:$0xff]
                  %934 = vst [vmem:[%s892 + $0x78] sm:$0xff] %v933
                  %v935 = vld [vmem:[%s891 + $0x58] sm:$0xff]
                  %936 = vst [vmem:[%s892 + $0x80] sm:$0xff] %v935
                  %v937 = vld [vmem:[%s891 + $0x60] sm:$0xff]
                  %938 = vst [vmem:[%s892 + $0x88] sm:$0xff] %v937
                  %v939 = vld [vmem:[%s891 + $0x68] sm:$0xff]
                  %940 = vst [vmem:[%s892 + $0x90] sm:$0xff] %v939
                  %v941 = vld [vmem:[%s891 + $0x60] sm:$0xff]
                  %942 = vst [vmem:[%s892 + $0x90] sm:$0xff] %v941
                  %v943 = vld [vmem:[%s891 + $0x68] sm:$0xff]
                  %944 = vst [vmem:[%s892 + $0x98] sm:$0xff] %v943
                  %v945 = vld [vmem:[%s891 + $0x70] sm:$0xff]
                  %946 = vst [vmem:[%s892 + $0xa0] sm:$0xff] %v945
                  %v947 = vld [vmem:[%s891 + $0x78] sm:$0xff]
                  %948 = vst [vmem:[%s892 + $0xa8] sm:$0xff] %v947
                  %v949 = vld [vmem:[%s891 + $0x70] sm:$0xff]
                  %950 = vst [vmem:[%s892 + $0xa8] sm:$0xff] %v949
                  %v951 = vld [vmem:[%s891 + $0x78] sm:$0xff]
                  %952 = vst [vmem:[%s892 + $0xb0] sm:$0xff] %v951
                  %v953 = vld [vmem:[%s891 + $0x80] sm:$0xff]
                  %954 = vst [vmem:[%s892 + $0xb8] sm:$0xff] %v953
                  %v955 = vld [vmem:[%s891 + $0x88] sm:$0xff]
                  %956 = vst [vmem:[%s892 + $0xc0] sm:$0xff] %v955
                  %v957 = vld [vmem:[%s891 + $0x80] sm:$0xff]
                  %958 = vst [vmem:[%s892 + $0xc0] sm:$0xff] %v957
                  %v959 = vld [vmem:[%s891 + $0x88] sm:$0xff]
                  %960 = vst [vmem:[%s892 + $0xc8] sm:$0xff] %v959
                  %v961 = vld [vmem:[%s891 + $0x90] sm:$0xff]
                  %962 = vst [vmem:[%s892 + $0xd0] sm:$0xff] %v961
                  %v963 = vld [vmem:[%s891 + $0x98] sm:$0xff]
                  %964 = vst [vmem:[%s892 + $0xd8] sm:$0xff] %v963
                  %v965 = vld [vmem:[%s891 + $0x90] sm:$0xff]
                  %966 = vst [vmem:[%s892 + $0xd8] sm:$0xff] %v965
                  %v967 = vld [vmem:[%s891 + $0x98] sm:$0xff]
                  %968 = vst [vmem:[%s892 + $0xe0] sm:$0xff] %v967
                  %v969 = vld [vmem:[%s891 + $0xa0] sm:$0xff]
                  %970 = vst [vmem:[%s892 + $0xe8] sm:$0xff] %v969
                  %v971 = vld [vmem:[%s891 + $0xa8] sm:$0xff]
                  %972 = vst [vmem:[%s892 + $0xf0] sm:$0xff] %v971
                  %v973 = vld [vmem:[%s891 + $0xa0] sm:$0xff]
                  %974 = vst [vmem:[%s892 + $0xf0] sm:$0xff] %v973
                  %v975 = vld [vmem:[%s891 + $0xa8] sm:$0xff]
                  %976 = vst [vmem:[%s892 + $0xf8] sm:$0xff] %v975
                  %v977 = vld [vmem:[%s891 + $0xb0] sm:$0xff]
                  %978 = vst [vmem:[%s892 + $0x100] sm:$0xff] %v977
                  %v979 = vld [vmem:[%s891 + $0xb8] sm:$0xff]
                  %980 = vst [vmem:[%s892 + $0x108] sm:$0xff] %v979
                  %v981 = vld [vmem:[%s891 + $0xb0] sm:$0xff]
                  %982 = vst [vmem:[%s892 + $0x108] sm:$0xff] %v981
                  %v983 = vld [vmem:[%s891 + $0xb8] sm:$0xff]
                  %984 = vst [vmem:[%s892 + $0x110] sm:$0xff] %v983
                  %v985 = vld [vmem:[%s891 + $0xc0] sm:$0xff]
                  %986 = vst [vmem:[%s892 + $0x118] sm:$0xff] %v985
                  %v987 = vld [vmem:[%s891 + $0xc8] sm:$0xff]
                  %988 = vst [vmem:[%s892 + $0x120] sm:$0xff] %v987
                  %v989 = vld [vmem:[%s891 + $0xc0] sm:$0xff]
                  %990 = vst [vmem:[%s892 + $0x120] sm:$0xff] %v989
                  %v991 = vld [vmem:[%s891 + $0xc8] sm:$0xff]
                  %992 = vst [vmem:[%s892 + $0x128] sm:$0xff] %v991
                  %v993 = vld [vmem:[%s891 + $0xd0] sm:$0xff]
                  %994 = vst [vmem:[%s892 + $0x130] sm:$0xff] %v993
                  %v995 = vld [vmem:[%s891 + $0xd8] sm:$0xff]
                  %996 = vst [vmem:[%s892 + $0x138] sm:$0xff] %v995
                  %v997 = vld [vmem:[%s891 + $0xd0] sm:$0xff]
                  %998 = vst [vmem:[%s892 + $0x138] sm:$0xff] %v997
                  %v999 = vld [vmem:[%s891 + $0xd8] sm:$0xff]
                  %1000 = vst [vmem:[%s892 + $0x140] sm:$0xff] %v999
                  %v1001 = vld [vmem:[%s891 + $0xe0] sm:$0xff]
                  %1002 = vst [vmem:[%s892 + $0x148] sm:$0xff] %v1001
                  %v1003 = vld [vmem:[%s891 + $0xe8] sm:$0xff]
                  %1004 = vst [vmem:[%s892 + $0x150] sm:$0xff] %v1003
                  %v1005 = vld [vmem:[%s891 + $0xe0] sm:$0xff]
                  %1006 = vst [vmem:[%s892 + $0x150] sm:$0xff] %v1005
                  %v1007 = vld [vmem:[%s891 + $0xe8] sm:$0xff]
                  %1008 = vst [vmem:[%s892 + $0x158] sm:$0xff] %v1007
                  %v1009 = vld [vmem:[%s891 + $0xf0] sm:$0xff]
                  %1010 = vst [vmem:[%s892 + $0x160] sm:$0xff] %v1009
                  %v1011 = vld [vmem:[%s891 + $0xf8] sm:$0xff]
                  %1012 = vst [vmem:[%s892 + $0x168] sm:$0xff] %v1011
                  %v1013 = vld [vmem:[%s891 + $0xf0] sm:$0xff]
                  %1014 = vst [vmem:[%s892 + $0x168] sm:$0xff] %v1013
                  %v1015 = vld [vmem:[%s891 + $0xf8] sm:$0xff]
                  %1016 = vst [vmem:[%s892 + $0x170] sm:$0xff] %v1015
                  %v1017 = vld [vmem:[%s891 + $0x100] sm:$0xff]
                  %1018 = vst [vmem:[%s892 + $0x178] sm:$0xff] %v1017
                  %v1019 = vld [vmem:[%s891 + $0x108] sm:$0xff]
                  %1020 = vst [vmem:[%s892 + $0x180] sm:$0xff] %v1019
                  %s1021 = sadd.s32 1, %s890
                  %p1022 = scmp.ge.s32.totalorder %s1021, %s879
                  %s1023 = scalar_select %p1022, 0, %s1021
                  %s1024 = sadd.s32 1, %s889
                  %s1025 = scalar_select %p1022, %s1024, %s889
                  %p1026 = scmp.ge.s32.totalorder %s1025, %s878
                  %s1027 = scalar_select %p1026, 0, %s1025
                  %s1028 = smul.u32 %s1027, 256
                  %s1029 = smul.u32 %s1023, 32
                  %s1030 = sadd.s32 %s1028, %s1029
                  %s1031 = smul.u32 %s1027, 384
                  %s1032 = smul.u32 %s1023, 32
                  %s1033 = sadd.s32 %s1031, %s1032
                  %s1034 = scalar_lea.vmem %s700, %s1030 [#allocation4]
                  %s1035 = scalar_lea.vmem %s718, %s1033
                $region67: #{tpu_custom_call.1} parent=61 // loop_footer
                  %s886 = sadd.s32 %s884, 1
                $region68: #{tpu_custom_call.1} parent=61 // loop_footer_branch
                  %883 = sbr.rel target = $region64
                $region69: #{tpu_custom_call.1} parent=61 // loop_exit
                  _
                %s1036 = sshrl.u32 %s877, 2
                %s1037 = sshrl.u32 %s706, 4
                %s1038 = sand.u32 %s706, 15
                %s1039 = smul.u32 %s1037, 16
                %s1040 = smul.u32 16, %s1039
                %s1041 = scalar_lea.vmem %s700, %s1040 [#allocation4]
                %s1042 = smul.u32 24, %s1039
                %s1043 = scalar_lea.vmem %s718, %s1042
                %s1044 = smul.u32 %s1038, %s1036
                // While loop
                $region70: #{tpu_custom_call.1} parent=61 // loop_pre_header
                  _
                $region71: #{tpu_custom_call.1} parent=61 // loop_header
                  %s1048 = sphi 0, %s1050
                  %p1049 = scmp.ge.s32.totalorder %s1048, %s1044
                  %s1053 = sphi 0, %s1071
                  %s1054 = sphi 0, %s1067
                  %s1055 = sphi %s1041, %s1078
                  %s1056 = sphi %s1043, %s1079
                $region72: #{tpu_custom_call.1} parent=61 // loop_header_branch
                  %1052 = sbr.rel (%p1049) target = $region76
                $region73: #{tpu_custom_call.1} parent=61 // loop_body
                  %v1057 = vld [vmem:[%s1055] sm:$0xff]
                  %1058 = vst [vmem:[%s1056] sm:$0xff] %v1057
                  %v1059 = vld [vmem:[%s1055 + $0x8] sm:$0xff]
                  %1060 = vst [vmem:[%s1056 + $0x8] sm:$0xff] %v1059
                  %v1061 = vld [vmem:[%s1055 + $0x10] sm:$0xff]
                  %1062 = vst [vmem:[%s1056 + $0x10] sm:$0xff] %v1061
                  %v1063 = vld [vmem:[%s1055 + $0x18] sm:$0xff]
                  %1064 = vst [vmem:[%s1056 + $0x18] sm:$0xff] %v1063
                  %s1065 = sadd.s32 1, %s1054
                  %p1066 = scmp.ge.s32.totalorder %s1065, %s1036
                  %s1067 = scalar_select %p1066, 0, %s1065
                  %s1068 = sadd.s32 1, %s1053
                  %s1069 = scalar_select %p1066, %s1068, %s1053
                  %p1070 = scmp.ge.s32.totalorder %s1069, %s1038
                  %s1071 = scalar_select %p1070, 0, %s1069
                  %s1072 = smul.u32 %s1071, 16
                  %s1073 = smul.u32 %s1067, 32
                  %s1074 = sadd.s32 %s1072, %s1073
                  %s1075 = smul.u32 %s1071, 24
                  %s1076 = smul.u32 %s1067, 32
                  %s1077 = sadd.s32 %s1075, %s1076
                  %s1078 = scalar_lea.vmem %s1041, %s1074 [#allocation4]
                  %s1079 = scalar_lea.vmem %s1043, %s1077
                $region74: #{tpu_custom_call.1} parent=61 // loop_footer
                  %s1050 = sadd.s32 %s1048, 1
                $region75: #{tpu_custom_call.1} parent=61 // loop_footer_branch
                  %1047 = sbr.rel target = $region71
                $region76: #{tpu_custom_call.1} parent=61 // loop_exit
                  _
                %s1080 = sshrl.u32 %s877, 2
                %s1081 = sand.u32 %s877, 3
                %s1082 = smul.u32 %s1080, 4
                %s1083 = smul.u32 128, %s1082
                %s1084 = sshra.s32 %s1083, 4
                %s1085 = scalar_lea.vmem %s700, %s1084 [#allocation4]
                %s1086 = smul.u32 128, %s1082
                %s1087 = sshra.s32 %s1086, 4
                %s1088 = scalar_lea.vmem %s718, %s1087
                %s1089 = smul.u32 %s706, %s1081
                // While loop
                $region77: #{tpu_custom_call.1} parent=61 // loop_pre_header
                  _
                $region78: #{tpu_custom_call.1} parent=61 // loop_header
                  %s1093 = sphi 0, %s1095
                  %p1094 = scmp.ge.s32.totalorder %s1093, %s1089
                  %s1098 = sphi 0, %s1110
                  %s1099 = sphi 0, %s1106
                  %s1100 = sphi %s1085, %s1117
                  %s1101 = sphi %s1088, %s1118
                $region79: #{tpu_custom_call.1} parent=61 // loop_header_branch
                  %1097 = sbr.rel (%p1094) target = $region83
                $region80: #{tpu_custom_call.1} parent=61 // loop_body
                  %v1102 = vld [vmem:[%s1100] sm:$0xff]
                  %1103 = vst [vmem:[%s1101] sm:$0xff] %v1102
                  %s1104 = sadd.s32 1, %s1099
                  %p1105 = scmp.ge.s32.totalorder %s1104, %s1081
                  %s1106 = scalar_select %p1105, 0, %s1104
                  %s1107 = sadd.s32 1, %s1098
                  %s1108 = scalar_select %p1105, %s1107, %s1098
                  %p1109 = scmp.ge.s32.totalorder %s1108, %s706
                  %s1110 = scalar_select %p1109, 0, %s1108
                  %s1111 = smul.u32 %s1110, 16
                  %s1112 = smul.u32 %s1106, 8
                  %s1113 = sadd.s32 %s1111, %s1112
                  %s1114 = smul.u32 %s1110, 24
                  %s1115 = smul.u32 %s1106, 8
                  %s1116 = sadd.s32 %s1114, %s1115
                  %s1117 = scalar_lea.vmem %s1085, %s1113 [#allocation4]
                  %s1118 = scalar_lea.vmem %s1088, %s1116
                $region81: #{tpu_custom_call.1} parent=61 // loop_footer
                  %s1095 = sadd.s32 %s1093, 1
                $region82: #{tpu_custom_call.1} parent=61 // loop_footer_branch
                  %1092 = sbr.rel target = $region78
                $region83: #{tpu_custom_call.1} parent=61 // loop_exit
                  _
              $region62: #{tpu_custom_call.1} parent=39 // pred_fallthru
                _
              %p1119 = pneg %p873
              // Predicated region
              $region84: #{tpu_custom_call.1} parent=39 // pred_check
                _
              $region85: #{tpu_custom_call.1} parent=39 // pred_check_branch
                %1121 = sbr.rel (%p873) target = $region87
              $region86: #{tpu_custom_call.1} parent=39 // pred_region
                %s1122 = sand.u32 %s719, 7
                %s1123 = ssub.s32 %s719, %s1122
                %s1124 = scalar_lea.vmem %s700, %s1123 [#allocation4]
                %s1125 = ssub.s32 %s719, %s1122
                %s1126 = scalar_lea.vmem %s718, %s1125
                %s1127 = sshrl.u32 %s719, 3
                %s1128 = sshrl.u32 %s706, 4
                %s1129 = sshrl.u32 %s1127, 2
                %s1130 = smul.u32 %s1128, %s1129
                // While loop
                $region88: #{tpu_custom_call.1} parent=86 // loop_pre_header
                  _
                $region89: #{tpu_custom_call.1} parent=86 // loop_header
                  %s1134 = sphi 0, %s1136
                  %p1135 = scmp.ge.s32.totalorder %s1134, %s1130
                  %s1139 = sphi 0, %s1277
                  %s1140 = sphi 0, %s1273
                  %s1141 = sphi %s700, %s1284
                  %s1142 = sphi %s718, %s1285
                $region90: #{tpu_custom_call.1} parent=86 // loop_header_branch
                  %1138 = sbr.rel (%p1135) target = $region94
                $region91: #{tpu_custom_call.1} parent=86 // loop_body
                  %v1143 = vld [vmem:[%s1141] sm:$0xff]
                  %1144 = vst [vmem:[%s1142] sm:$0xff] %v1143
                  %v1145 = vld [vmem:[%s1141 + $0x8] sm:$0xff]
                  %1146 = vst [vmem:[%s1142 + $0x8] sm:$0xff] %v1145
                  %v1147 = vld [vmem:[%s1141 + $0x10] sm:$0xff]
                  %1148 = vst [vmem:[%s1142 + $0x10] sm:$0xff] %v1147
                  %v1149 = vld [vmem:[%s1141 + $0x18] sm:$0xff]
                  %1150 = vst [vmem:[%s1142 + $0x18] sm:$0xff] %v1149
                  %v1151 = vld [vmem:[%s1141 + $0x10] sm:$0xff]
                  %1152 = vst [vmem:[%s1142 + $0x18] sm:$0xff] %v1151
                  %v1153 = vld [vmem:[%s1141 + $0x18] sm:$0xff]
                  %1154 = vst [vmem:[%s1142 + $0x20] sm:$0xff] %v1153
                  %v1155 = vld [vmem:[%s1141 + $0x20] sm:$0xff]
                  %1156 = vst [vmem:[%s1142 + $0x28] sm:$0xff] %v1155
                  %v1157 = vld [vmem:[%s1141 + $0x28] sm:$0xff]
                  %1158 = vst [vmem:[%s1142 + $0x30] sm:$0xff] %v1157
                  %v1159 = vld [vmem:[%s1141 + $0x20] sm:$0xff]
                  %1160 = vst [vmem:[%s1142 + $0x30] sm:$0xff] %v1159
                  %v1161 = vld [vmem:[%s1141 + $0x28] sm:$0xff]
                  %1162 = vst [vmem:[%s1142 + $0x38] sm:$0xff] %v1161
                  %v1163 = vld [vmem:[%s1141 + $0x30] sm:$0xff]
                  %1164 = vst [vmem:[%s1142 + $0x40] sm:$0xff] %v1163
                  %v1165 = vld [vmem:[%s1141 + $0x38] sm:$0xff]
                  %1166 = vst [vmem:[%s1142 + $0x48] sm:$0xff] %v1165
                  %v1167 = vld [vmem:[%s1141 + $0x30] sm:$0xff]
                  %1168 = vst [vmem:[%s1142 + $0x48] sm:$0xff] %v1167
                  %v1169 = vld [vmem:[%s1141 + $0x38] sm:$0xff]
                  %1170 = vst [vmem:[%s1142 + $0x50] sm:$0xff] %v1169
                  %v1171 = vld [vmem:[%s1141 + $0x40] sm:$0xff]
                  %1172 = vst [vmem:[%s1142 + $0x58] sm:$0xff] %v1171
                  %v1173 = vld [vmem:[%s1141 + $0x48] sm:$0xff]
                  %1174 = vst [vmem:[%s1142 + $0x60] sm:$0xff] %v1173
                  %v1175 = vld [vmem:[%s1141 + $0x40] sm:$0xff]
                  %1176 = vst [vmem:[%s1142 + $0x60] sm:$0xff] %v1175
                  %v1177 = vld [vmem:[%s1141 + $0x48] sm:$0xff]
                  %1178 = vst [vmem:[%s1142 + $0x68] sm:$0xff] %v1177
                  %v1179 = vld [vmem:[%s1141 + $0x50] sm:$0xff]
                  %1180 = vst [vmem:[%s1142 + $0x70] sm:$0xff] %v1179
                  %v1181 = vld [vmem:[%s1141 + $0x58] sm:$0xff]
                  %1182 = vst [vmem:[%s1142 + $0x78] sm:$0xff] %v1181
                  %v1183 = vld [vmem:[%s1141 + $0x50] sm:$0xff]
                  %1184 = vst [vmem:[%s1142 + $0x78] sm:$0xff] %v1183
                  %v1185 = vld [vmem:[%s1141 + $0x58] sm:$0xff]
                  %1186 = vst [vmem:[%s1142 + $0x80] sm:$0xff] %v1185
                  %v1187 = vld [vmem:[%s1141 + $0x60] sm:$0xff]
                  %1188 = vst [vmem:[%s1142 + $0x88] sm:$0xff] %v1187
                  %v1189 = vld [vmem:[%s1141 + $0x68] sm:$0xff]
                  %1190 = vst [vmem:[%s1142 + $0x90] sm:$0xff] %v1189
                  %v1191 = vld [vmem:[%s1141 + $0x60] sm:$0xff]
                  %1192 = vst [vmem:[%s1142 + $0x90] sm:$0xff] %v1191
                  %v1193 = vld [vmem:[%s1141 + $0x68] sm:$0xff]
                  %1194 = vst [vmem:[%s1142 + $0x98] sm:$0xff] %v1193
                  %v1195 = vld [vmem:[%s1141 + $0x70] sm:$0xff]
                  %1196 = vst [vmem:[%s1142 + $0xa0] sm:$0xff] %v1195
                  %v1197 = vld [vmem:[%s1141 + $0x78] sm:$0xff]
                  %1198 = vst [vmem:[%s1142 + $0xa8] sm:$0xff] %v1197
                  %v1199 = vld [vmem:[%s1141 + $0x70] sm:$0xff]
                  %1200 = vst [vmem:[%s1142 + $0xa8] sm:$0xff] %v1199
                  %v1201 = vld [vmem:[%s1141 + $0x78] sm:$0xff]
                  %1202 = vst [vmem:[%s1142 + $0xb0] sm:$0xff] %v1201
                  %v1203 = vld [vmem:[%s1141 + $0x80] sm:$0xff]
                  %1204 = vst [vmem:[%s1142 + $0xb8] sm:$0xff] %v1203
                  %v1205 = vld [vmem:[%s1141 + $0x88] sm:$0xff]
                  %1206 = vst [vmem:[%s1142 + $0xc0] sm:$0xff] %v1205
                  %v1207 = vld [vmem:[%s1141 + $0x80] sm:$0xff]
                  %1208 = vst [vmem:[%s1142 + $0xc0] sm:$0xff] %v1207
                  %v1209 = vld [vmem:[%s1141 + $0x88] sm:$0xff]
                  %1210 = vst [vmem:[%s1142 + $0xc8] sm:$0xff] %v1209
                  %v1211 = vld [vmem:[%s1141 + $0x90] sm:$0xff]
                  %1212 = vst [vmem:[%s1142 + $0xd0] sm:$0xff] %v1211
                  %v1213 = vld [vmem:[%s1141 + $0x98] sm:$0xff]
                  %1214 = vst [vmem:[%s1142 + $0xd8] sm:$0xff] %v1213
                  %v1215 = vld [vmem:[%s1141 + $0x90] sm:$0xff]
                  %1216 = vst [vmem:[%s1142 + $0xd8] sm:$0xff] %v1215
                  %v1217 = vld [vmem:[%s1141 + $0x98] sm:$0xff]
                  %1218 = vst [vmem:[%s1142 + $0xe0] sm:$0xff] %v1217
                  %v1219 = vld [vmem:[%s1141 + $0xa0] sm:$0xff]
                  %1220 = vst [vmem:[%s1142 + $0xe8] sm:$0xff] %v1219
                  %v1221 = vld [vmem:[%s1141 + $0xa8] sm:$0xff]
                  %1222 = vst [vmem:[%s1142 + $0xf0] sm:$0xff] %v1221
                  %v1223 = vld [vmem:[%s1141 + $0xa0] sm:$0xff]
                  %1224 = vst [vmem:[%s1142 + $0xf0] sm:$0xff] %v1223
                  %v1225 = vld [vmem:[%s1141 + $0xa8] sm:$0xff]
                  %1226 = vst [vmem:[%s1142 + $0xf8] sm:$0xff] %v1225
                  %v1227 = vld [vmem:[%s1141 + $0xb0] sm:$0xff]
                  %1228 = vst [vmem:[%s1142 + $0x100] sm:$0xff] %v1227
                  %v1229 = vld [vmem:[%s1141 + $0xb8] sm:$0xff]
                  %1230 = vst [vmem:[%s1142 + $0x108] sm:$0xff] %v1229
                  %v1231 = vld [vmem:[%s1141 + $0xb0] sm:$0xff]
                  %1232 = vst [vmem:[%s1142 + $0x108] sm:$0xff] %v1231
                  %v1233 = vld [vmem:[%s1141 + $0xb8] sm:$0xff]
                  %1234 = vst [vmem:[%s1142 + $0x110] sm:$0xff] %v1233
                  %v1235 = vld [vmem:[%s1141 + $0xc0] sm:$0xff]
                  %1236 = vst [vmem:[%s1142 + $0x118] sm:$0xff] %v1235
                  %v1237 = vld [vmem:[%s1141 + $0xc8] sm:$0xff]
                  %1238 = vst [vmem:[%s1142 + $0x120] sm:$0xff] %v1237
                  %v1239 = vld [vmem:[%s1141 + $0xc0] sm:$0xff]
                  %1240 = vst [vmem:[%s1142 + $0x120] sm:$0xff] %v1239
                  %v1241 = vld [vmem:[%s1141 + $0xc8] sm:$0xff]
                  %1242 = vst [vmem:[%s1142 + $0x128] sm:$0xff] %v1241
                  %v1243 = vld [vmem:[%s1141 + $0xd0] sm:$0xff]
                  %1244 = vst [vmem:[%s1142 + $0x130] sm:$0xff] %v1243
                  %v1245 = vld [vmem:[%s1141 + $0xd8] sm:$0xff]
                  %1246 = vst [vmem:[%s1142 + $0x138] sm:$0xff] %v1245
                  %v1247 = vld [vmem:[%s1141 + $0xd0] sm:$0xff]
                  %1248 = vst [vmem:[%s1142 + $0x138] sm:$0xff] %v1247
                  %v1249 = vld [vmem:[%s1141 + $0xd8] sm:$0xff]
                  %1250 = vst [vmem:[%s1142 + $0x140] sm:$0xff] %v1249
                  %v1251 = vld [vmem:[%s1141 + $0xe0] sm:$0xff]
                  %1252 = vst [vmem:[%s1142 + $0x148] sm:$0xff] %v1251
                  %v1253 = vld [vmem:[%s1141 + $0xe8] sm:$0xff]
                  %1254 = vst [vmem:[%s1142 + $0x150] sm:$0xff] %v1253
                  %v1255 = vld [vmem:[%s1141 + $0xe0] sm:$0xff]
                  %1256 = vst [vmem:[%s1142 + $0x150] sm:$0xff] %v1255
                  %v1257 = vld [vmem:[%s1141 + $0xe8] sm:$0xff]
                  %1258 = vst [vmem:[%s1142 + $0x158] sm:$0xff] %v1257
                  %v1259 = vld [vmem:[%s1141 + $0xf0] sm:$0xff]
                  %1260 = vst [vmem:[%s1142 + $0x160] sm:$0xff] %v1259
                  %v1261 = vld [vmem:[%s1141 + $0xf8] sm:$0xff]
                  %1262 = vst [vmem:[%s1142 + $0x168] sm:$0xff] %v1261
                  %v1263 = vld [vmem:[%s1141 + $0xf0] sm:$0xff]
                  %1264 = vst [vmem:[%s1142 + $0x168] sm:$0xff] %v1263
                  %v1265 = vld [vmem:[%s1141 + $0xf8] sm:$0xff]
                  %1266 = vst [vmem:[%s1142 + $0x170] sm:$0xff] %v1265
                  %v1267 = vld [vmem:[%s1141 + $0x100] sm:$0xff]
                  %1268 = vst [vmem:[%s1142 + $0x178] sm:$0xff] %v1267
                  %v1269 = vld [vmem:[%s1141 + $0x108] sm:$0xff]
                  %1270 = vst [vmem:[%s1142 + $0x180] sm:$0xff] %v1269
                  %s1271 = sadd.s32 1, %s1140
                  %p1272 = scmp.ge.s32.totalorder %s1271, %s1129
                  %s1273 = scalar_select %p1272, 0, %s1271
                  %s1274 = sadd.s32 1, %s1139
                  %s1275 = scalar_select %p1272, %s1274, %s1139
                  %p1276 = scmp.ge.s32.totalorder %s1275, %s1128
                  %s1277 = scalar_select %p1276, 0, %s1275
                  %s1278 = smul.u32 %s1277, 256
                  %s1279 = smul.u32 %s1273, 32
                  %s1280 = sadd.s32 %s1278, %s1279
                  %s1281 = smul.u32 %s1277, 384
                  %s1282 = smul.u32 %s1273, 32
                  %s1283 = sadd.s32 %s1281, %s1282
                  %s1284 = scalar_lea.vmem %s700, %s1280 [#allocation4]
                  %s1285 = scalar_lea.vmem %s718, %s1283
                $region92: #{tpu_custom_call.1} parent=86 // loop_footer
                  %s1136 = sadd.s32 %s1134, 1
                $region93: #{tpu_custom_call.1} parent=86 // loop_footer_branch
                  %1133 = sbr.rel target = $region89
                $region94: #{tpu_custom_call.1} parent=86 // loop_exit
                  _
                %s1286 = sshrl.u32 %s1127, 2
                %s1287 = sshrl.u32 %s706, 4
                %s1288 = sand.u32 %s706, 15
                %s1289 = smul.u32 %s1287, 16
                %s1290 = smul.u32 16, %s1289
                %s1291 = scalar_lea.vmem %s700, %s1290 [#allocation4]
                %s1292 = smul.u32 24, %s1289
                %s1293 = scalar_lea.vmem %s718, %s1292
                %s1294 = smul.u32 %s1288, %s1286
                // While loop
                $region95: #{tpu_custom_call.1} parent=86 // loop_pre_header
                  _
                $region96: #{tpu_custom_call.1} parent=86 // loop_header
                  %s1298 = sphi 0, %s1300
                  %p1299 = scmp.ge.s32.totalorder %s1298, %s1294
                  %s1303 = sphi 0, %s1321
                  %s1304 = sphi 0, %s1317
                  %s1305 = sphi %s1291, %s1328
                  %s1306 = sphi %s1293, %s1329
                $region97: #{tpu_custom_call.1} parent=86 // loop_header_branch
                  %1302 = sbr.rel (%p1299) target = $region101
                $region98: #{tpu_custom_call.1} parent=86 // loop_body
                  %v1307 = vld [vmem:[%s1305] sm:$0xff]
                  %1308 = vst [vmem:[%s1306] sm:$0xff] %v1307
                  %v1309 = vld [vmem:[%s1305 + $0x8] sm:$0xff]
                  %1310 = vst [vmem:[%s1306 + $0x8] sm:$0xff] %v1309
                  %v1311 = vld [vmem:[%s1305 + $0x10] sm:$0xff]
                  %1312 = vst [vmem:[%s1306 + $0x10] sm:$0xff] %v1311
                  %v1313 = vld [vmem:[%s1305 + $0x18] sm:$0xff]
                  %1314 = vst [vmem:[%s1306 + $0x18] sm:$0xff] %v1313
                  %s1315 = sadd.s32 1, %s1304
                  %p1316 = scmp.ge.s32.totalorder %s1315, %s1286
                  %s1317 = scalar_select %p1316, 0, %s1315
                  %s1318 = sadd.s32 1, %s1303
                  %s1319 = scalar_select %p1316, %s1318, %s1303
                  %p1320 = scmp.ge.s32.totalorder %s1319, %s1288
                  %s1321 = scalar_select %p1320, 0, %s1319
                  %s1322 = smul.u32 %s1321, 16
                  %s1323 = smul.u32 %s1317, 32
                  %s1324 = sadd.s32 %s1322, %s1323
                  %s1325 = smul.u32 %s1321, 24
                  %s1326 = smul.u32 %s1317, 32
                  %s1327 = sadd.s32 %s1325, %s1326
                  %s1328 = scalar_lea.vmem %s1291, %s1324 [#allocation4]
                  %s1329 = scalar_lea.vmem %s1293, %s1327
                $region99: #{tpu_custom_call.1} parent=86 // loop_footer
                  %s1300 = sadd.s32 %s1298, 1
                $region100: #{tpu_custom_call.1} parent=86 // loop_footer_branch
                  %1297 = sbr.rel target = $region96
                $region101: #{tpu_custom_call.1} parent=86 // loop_exit
                  _
                %s1330 = sshrl.u32 %s1127, 2
                %s1331 = sand.u32 %s1127, 3
                %s1332 = smul.u32 %s1330, 4
                %s1333 = smul.u32 128, %s1332
                %s1334 = sshra.s32 %s1333, 4
                %s1335 = scalar_lea.vmem %s700, %s1334 [#allocation4]
                %s1336 = smul.u32 128, %s1332
                %s1337 = sshra.s32 %s1336, 4
                %s1338 = scalar_lea.vmem %s718, %s1337
                %s1339 = smul.u32 %s706, %s1331
                // While loop
                $region102: #{tpu_custom_call.1} parent=86 // loop_pre_header
                  _
                $region103: #{tpu_custom_call.1} parent=86 // loop_header
                  %s1343 = sphi 0, %s1345
                  %p1344 = scmp.ge.s32.totalorder %s1343, %s1339
                  %s1348 = sphi 0, %s1360
                  %s1349 = sphi 0, %s1356
                  %s1350 = sphi %s1335, %s1367
                  %s1351 = sphi %s1338, %s1368
                $region104: #{tpu_custom_call.1} parent=86 // loop_header_branch
                  %1347 = sbr.rel (%p1344) target = $region108
                $region105: #{tpu_custom_call.1} parent=86 // loop_body
                  %v1352 = vld [vmem:[%s1350] sm:$0xff]
                  %1353 = vst [vmem:[%s1351] sm:$0xff] %v1352
                  %s1354 = sadd.s32 1, %s1349
                  %p1355 = scmp.ge.s32.totalorder %s1354, %s1331
                  %s1356 = scalar_select %p1355, 0, %s1354
                  %s1357 = sadd.s32 1, %s1348
                  %s1358 = scalar_select %p1355, %s1357, %s1348
                  %p1359 = scmp.ge.s32.totalorder %s1358, %s706
                  %s1360 = scalar_select %p1359, 0, %s1358
                  %s1361 = smul.u32 %s1360, 16
                  %s1362 = smul.u32 %s1356, 8
                  %s1363 = sadd.s32 %s1361, %s1362
                  %s1364 = smul.u32 %s1360, 24
                  %s1365 = smul.u32 %s1356, 8
                  %s1366 = sadd.s32 %s1364, %s1365
                  %s1367 = scalar_lea.vmem %s1335, %s1363 [#allocation4]
                  %s1368 = scalar_lea.vmem %s1338, %s1366
                $region106: #{tpu_custom_call.1} parent=86 // loop_footer
                  %s1345 = sadd.s32 %s1343, 1
                $region107: #{tpu_custom_call.1} parent=86 // loop_footer_branch
                  %1342 = sbr.rel target = $region103
                $region108: #{tpu_custom_call.1} parent=86 // loop_exit
                  _
                %s1369 = sshllo.u32 0, %s1122
                %s1370 = sdiv.u32.pop %s706, 49
                %s1371 = srem.u32.pop %s706, 49
                // While loop
                $region109: #{tpu_custom_call.1} parent=86 // loop_pre_header
                  _
                $region110: #{tpu_custom_call.1} parent=86 // loop_header
                  %s1373 = sphi 0, %s1375
                  %p1374 = scmp.ge.s32.totalorder %s1373, %s1370
                  %s1378 = sphi 0, %s1481
                  %s1379 = sphi %s1124, %s1484
                  %s1380 = sphi %s1126, %s1485
                $region111: #{tpu_custom_call.1} parent=86 // loop_header_branch
                  %1377 = sbr.rel (%p1374) target = $region115
                $region112: #{tpu_custom_call.1} parent=86 // loop_body
                  %v1381 = vld [vmem:[%s1379] sm:%s1369]
                  %1382 = vst [vmem:[%s1380] sm:%s1369] %v1381
                  %v1383 = vld [vmem:[%s1379 + $0x10] sm:%s1369]
                  %1384 = vst [vmem:[%s1380 + $0x18] sm:%s1369] %v1383
                  %v1385 = vld [vmem:[%s1379 + $0x20] sm:%s1369]
                  %1386 = vst [vmem:[%s1380 + $0x30] sm:%s1369] %v1385
                  %v1387 = vld [vmem:[%s1379 + $0x30] sm:%s1369]
                  %1388 = vst [vmem:[%s1380 + $0x48] sm:%s1369] %v1387
                  %v1389 = vld [vmem:[%s1379 + $0x40] sm:%s1369]
                  %1390 = vst [vmem:[%s1380 + $0x60] sm:%s1369] %v1389
                  %v1391 = vld [vmem:[%s1379 + $0x50] sm:%s1369]
                  %1392 = vst [vmem:[%s1380 + $0x78] sm:%s1369] %v1391
                  %v1393 = vld [vmem:[%s1379 + $0x60] sm:%s1369]
                  %1394 = vst [vmem:[%s1380 + $0x90] sm:%s1369] %v1393
                  %v1395 = vld [vmem:[%s1379 + $0x70] sm:%s1369]
                  %1396 = vst [vmem:[%s1380 + $0xa8] sm:%s1369] %v1395
                  %v1397 = vld [vmem:[%s1379 + $0x80] sm:%s1369]
                  %1398 = vst [vmem:[%s1380 + $0xc0] sm:%s1369] %v1397
                  %v1399 = vld [vmem:[%s1379 + $0x90] sm:%s1369]
                  %1400 = vst [vmem:[%s1380 + $0xd8] sm:%s1369] %v1399
                  %v1401 = vld [vmem:[%s1379 + $0xa0] sm:%s1369]
                  %1402 = vst [vmem:[%s1380 + $0xf0] sm:%s1369] %v1401
                  %v1403 = vld [vmem:[%s1379 + $0xb0] sm:%s1369]
                  %1404 = vst [vmem:[%s1380 + $0x108] sm:%s1369] %v1403
                  %v1405 = vld [vmem:[%s1379 + $0xc0] sm:%s1369]
                  %1406 = vst [vmem:[%s1380 + $0x120] sm:%s1369] %v1405
                  %v1407 = vld [vmem:[%s1379 + $0xd0] sm:%s1369]
                  %1408 = vst [vmem:[%s1380 + $0x138] sm:%s1369] %v1407
                  %v1409 = vld [vmem:[%s1379 + $0xe0] sm:%s1369]
                  %1410 = vst [vmem:[%s1380 + $0x150] sm:%s1369] %v1409
                  %v1411 = vld [vmem:[%s1379 + $0xf0] sm:%s1369]
                  %1412 = vst [vmem:[%s1380 + $0x168] sm:%s1369] %v1411
                  %v1413 = vld [vmem:[%s1379 + $0x100] sm:%s1369]
                  %1414 = vst [vmem:[%s1380 + $0x180] sm:%s1369] %v1413
                  %v1415 = vld [vmem:[%s1379 + $0x110] sm:%s1369]
                  %1416 = vst [vmem:[%s1380 + $0x198] sm:%s1369] %v1415
                  %v1417 = vld [vmem:[%s1379 + $0x120] sm:%s1369]
                  %1418 = vst [vmem:[%s1380 + $0x1b0] sm:%s1369] %v1417
                  %v1419 = vld [vmem:[%s1379 + $0x130] sm:%s1369]
                  %1420 = vst [vmem:[%s1380 + $0x1c8] sm:%s1369] %v1419
                  %v1421 = vld [vmem:[%s1379 + $0x140] sm:%s1369]
                  %1422 = vst [vmem:[%s1380 + $0x1e0] sm:%s1369] %v1421
                  %v1423 = vld [vmem:[%s1379 + $0x150] sm:%s1369]
                  %1424 = vst [vmem:[%s1380 + $0x1f8] sm:%s1369] %v1423
                  %v1425 = vld [vmem:[%s1379 + $0x160] sm:%s1369]
                  %1426 = vst [vmem:[%s1380 + $0x210] sm:%s1369] %v1425
                  %v1427 = vld [vmem:[%s1379 + $0x170] sm:%s1369]
                  %1428 = vst [vmem:[%s1380 + $0x228] sm:%s1369] %v1427
                  %v1429 = vld [vmem:[%s1379 + $0x180] sm:%s1369]
                  %1430 = vst [vmem:[%s1380 + $0x240] sm:%s1369] %v1429
                  %v1431 = vld [vmem:[%s1379 + $0x190] sm:%s1369]
                  %1432 = vst [vmem:[%s1380 + $0x258] sm:%s1369] %v1431
                  %v1433 = vld [vmem:[%s1379 + $0x1a0] sm:%s1369]
                  %1434 = vst [vmem:[%s1380 + $0x270] sm:%s1369] %v1433
                  %v1435 = vld [vmem:[%s1379 + $0x1b0] sm:%s1369]
                  %1436 = vst [vmem:[%s1380 + $0x288] sm:%s1369] %v1435
                  %v1437 = vld [vmem:[%s1379 + $0x1c0] sm:%s1369]
                  %1438 = vst [vmem:[%s1380 + $0x2a0] sm:%s1369] %v1437
                  %v1439 = vld [vmem:[%s1379 + $0x1d0] sm:%s1369]
                  %1440 = vst [vmem:[%s1380 + $0x2b8] sm:%s1369] %v1439
                  %v1441 = vld [vmem:[%s1379 + $0x1e0] sm:%s1369]
                  %1442 = vst [vmem:[%s1380 + $0x2d0] sm:%s1369] %v1441
                  %v1443 = vld [vmem:[%s1379 + $0x1f0] sm:%s1369]
                  %1444 = vst [vmem:[%s1380 + $0x2e8] sm:%s1369] %v1443
                  %v1445 = vld [vmem:[%s1379 + $0x200] sm:%s1369]
                  %1446 = vst [vmem:[%s1380 + $0x300] sm:%s1369] %v1445
                  %v1447 = vld [vmem:[%s1379 + $0x210] sm:%s1369]
                  %1448 = vst [vmem:[%s1380 + $0x318] sm:%s1369] %v1447
                  %v1449 = vld [vmem:[%s1379 + $0x220] sm:%s1369]
                  %1450 = vst [vmem:[%s1380 + $0x330] sm:%s1369] %v1449
                  %v1451 = vld [vmem:[%s1379 + $0x230] sm:%s1369]
                  %1452 = vst [vmem:[%s1380 + $0x348] sm:%s1369] %v1451
                  %v1453 = vld [vmem:[%s1379 + $0x240] sm:%s1369]
                  %1454 = vst [vmem:[%s1380 + $0x360] sm:%s1369] %v1453
                  %v1455 = vld [vmem:[%s1379 + $0x250] sm:%s1369]
                  %1456 = vst [vmem:[%s1380 + $0x378] sm:%s1369] %v1455
                  %v1457 = vld [vmem:[%s1379 + $0x260] sm:%s1369]
                  %1458 = vst [vmem:[%s1380 + $0x390] sm:%s1369] %v1457
                  %v1459 = vld [vmem:[%s1379 + $0x270] sm:%s1369]
                  %1460 = vst [vmem:[%s1380 + $0x3a8] sm:%s1369] %v1459
                  %v1461 = vld [vmem:[%s1379 + $0x280] sm:%s1369]
                  %1462 = vst [vmem:[%s1380 + $0x3c0] sm:%s1369] %v1461
                  %v1463 = vld [vmem:[%s1379 + $0x290] sm:%s1369]
                  %1464 = vst [vmem:[%s1380 + $0x3d8] sm:%s1369] %v1463
                  %v1465 = vld [vmem:[%s1379 + $0x2a0] sm:%s1369]
                  %1466 = vst [vmem:[%s1380 + $0x3f0] sm:%s1369] %v1465
                  %v1467 = vld [vmem:[%s1379 + $0x2b0] sm:%s1369]
                  %1468 = vst [vmem:[%s1380 + $0x408] sm:%s1369] %v1467
                  %v1469 = vld [vmem:[%s1379 + $0x2c0] sm:%s1369]
                  %1470 = vst [vmem:[%s1380 + $0x420] sm:%s1369] %v1469
                  %v1471 = vld [vmem:[%s1379 + $0x2d0] sm:%s1369]
                  %1472 = vst [vmem:[%s1380 + $0x438] sm:%s1369] %v1471
                  %v1473 = vld [vmem:[%s1379 + $0x2e0] sm:%s1369]
                  %1474 = vst [vmem:[%s1380 + $0x450] sm:%s1369] %v1473
                  %v1475 = vld [vmem:[%s1379 + $0x2f0] sm:%s1369]
                  %1476 = vst [vmem:[%s1380 + $0x468] sm:%s1369] %v1475
                  %v1477 = vld [vmem:[%s1379 + $0x300] sm:%s1369]
                  %1478 = vst [vmem:[%s1380 + $0x480] sm:%s1369] %v1477
                  %s1479 = sadd.s32 1, %s1378
                  %p1480 = scmp.ge.s32.totalorder %s1479, %s1370
                  %s1481 = scalar_select %p1480, 0, %s1479
                  %s1482 = smul.u32 %s1481, 784
                  %s1483 = smul.u32 %s1481, 1176
                  %s1484 = scalar_lea.vmem %s1124, %s1482 [#allocation4]
                  %s1485 = scalar_lea.vmem %s1126, %s1483
                $region113: #{tpu_custom_call.1} parent=86 // loop_footer
                  %s1375 = sadd.s32 %s1373, 1
                $region114: #{tpu_custom_call.1} parent=86 // loop_footer_branch
                  %1372 = sbr.rel target = $region110
                $region115: #{tpu_custom_call.1} parent=86 // loop_exit
                  _
                %s1486 = sdiv.u32.pop %s706, 49
                %s1487 = srem.u32.pop %s706, 49
                %s1488 = smul.u32 %s1486, 49
                %s1489 = smul.u32 16, %s1488
                %s1490 = scalar_lea.vmem %s1124, %s1489 [#allocation4]
                %s1491 = smul.u32 24, %s1488
                %s1492 = scalar_lea.vmem %s1126, %s1491
                // While loop
                $region116: #{tpu_custom_call.1} parent=86 // loop_pre_header
                  _
                $region117: #{tpu_custom_call.1} parent=86 // loop_header
                  %s1494 = sphi 0, %s1496
                  %p1495 = scmp.ge.s32.totalorder %s1494, %s1487
                  %s1499 = sphi 0, %s1506
                  %s1500 = sphi %s1490, %s1509
                  %s1501 = sphi %s1492, %s1510
                $region118: #{tpu_custom_call.1} parent=86 // loop_header_branch
                  %1498 = sbr.rel (%p1495) target = $region122
                $region119: #{tpu_custom_call.1} parent=86 // loop_body
                  %v1502 = vld [vmem:[%s1500] sm:%s1369]
                  %1503 = vst [vmem:[%s1501] sm:%s1369] %v1502
                  %s1504 = sadd.s32 1, %s1499
                  %p1505 = scmp.ge.s32.totalorder %s1504, %s1487
                  %s1506 = scalar_select %p1505, 0, %s1504
                  %s1507 = smul.u32 %s1506, 16
                  %s1508 = smul.u32 %s1506, 24
                  %s1509 = scalar_lea.vmem %s1490, %s1507 [#allocation4]
                  %s1510 = scalar_lea.vmem %s1492, %s1508
                $region120: #{tpu_custom_call.1} parent=86 // loop_footer
                  %s1496 = sadd.s32 %s1494, 1
                $region121: #{tpu_custom_call.1} parent=86 // loop_footer_branch
                  %1493 = sbr.rel target = $region117
                $region122: #{tpu_custom_call.1} parent=86 // loop_exit
                  _
              $region87: #{tpu_custom_call.1} parent=39 // pred_fallthru
                _
            $region40: #{tpu_custom_call.1} parent=35 // pred_fallthru
              _
            // Predicated region
            $region41: #{tpu_custom_call.1} parent=35 // pred_check
              %p727 = pneg %p723
            $region42: #{tpu_custom_call.1} parent=35 // pred_check_branch
              %729 = sbr.rel (%p727) target = $region44
            $region43: #{tpu_custom_call.1} parent=35 // pred_region
              %s730 = sshllo.u32 0, %s719
              %s731 = sdiv.u32.pop %s706, 49
              %s732 = srem.u32.pop %s706, 49
              // While loop
              $region45: #{tpu_custom_call.1} parent=43 // loop_pre_header
                _
              $region46: #{tpu_custom_call.1} parent=43 // loop_header
                %s734 = sphi 0, %s736
                %p735 = scmp.ge.s32.totalorder %s734, %s731
                %s739 = sphi 0, %s842
                %s740 = sphi %s700, %s845
                %s741 = sphi %s718, %s846
              $region47: #{tpu_custom_call.1} parent=43 // loop_header_branch
                %738 = sbr.rel (%p735) target = $region51
              $region48: #{tpu_custom_call.1} parent=43 // loop_body
                %v742 = vld [vmem:[%s740] sm:%s730]
                %743 = vst [vmem:[%s741] sm:%s730] %v742
                %v744 = vld [vmem:[%s740 + $0x10] sm:%s730]
                %745 = vst [vmem:[%s741 + $0x18] sm:%s730] %v744
                %v746 = vld [vmem:[%s740 + $0x20] sm:%s730]
                %747 = vst [vmem:[%s741 + $0x30] sm:%s730] %v746
                %v748 = vld [vmem:[%s740 + $0x30] sm:%s730]
                %749 = vst [vmem:[%s741 + $0x48] sm:%s730] %v748
                %v750 = vld [vmem:[%s740 + $0x40] sm:%s730]
                %751 = vst [vmem:[%s741 + $0x60] sm:%s730] %v750
                %v752 = vld [vmem:[%s740 + $0x50] sm:%s730]
                %753 = vst [vmem:[%s741 + $0x78] sm:%s730] %v752
                %v754 = vld [vmem:[%s740 + $0x60] sm:%s730]
                %755 = vst [vmem:[%s741 + $0x90] sm:%s730] %v754
                %v756 = vld [vmem:[%s740 + $0x70] sm:%s730]
                %757 = vst [vmem:[%s741 + $0xa8] sm:%s730] %v756
                %v758 = vld [vmem:[%s740 + $0x80] sm:%s730]
                %759 = vst [vmem:[%s741 + $0xc0] sm:%s730] %v758
                %v760 = vld [vmem:[%s740 + $0x90] sm:%s730]
                %761 = vst [vmem:[%s741 + $0xd8] sm:%s730] %v760
                %v762 = vld [vmem:[%s740 + $0xa0] sm:%s730]
                %763 = vst [vmem:[%s741 + $0xf0] sm:%s730] %v762
                %v764 = vld [vmem:[%s740 + $0xb0] sm:%s730]
                %765 = vst [vmem:[%s741 + $0x108] sm:%s730] %v764
                %v766 = vld [vmem:[%s740 + $0xc0] sm:%s730]
                %767 = vst [vmem:[%s741 + $0x120] sm:%s730] %v766
                %v768 = vld [vmem:[%s740 + $0xd0] sm:%s730]
                %769 = vst [vmem:[%s741 + $0x138] sm:%s730] %v768
                %v770 = vld [vmem:[%s740 + $0xe0] sm:%s730]
                %771 = vst [vmem:[%s741 + $0x150] sm:%s730] %v770
                %v772 = vld [vmem:[%s740 + $0xf0] sm:%s730]
                %773 = vst [vmem:[%s741 + $0x168] sm:%s730] %v772
                %v774 = vld [vmem:[%s740 + $0x100] sm:%s730]
                %775 = vst [vmem:[%s741 + $0x180] sm:%s730] %v774
                %v776 = vld [vmem:[%s740 + $0x110] sm:%s730]
                %777 = vst [vmem:[%s741 + $0x198] sm:%s730] %v776
                %v778 = vld [vmem:[%s740 + $0x120] sm:%s730]
                %779 = vst [vmem:[%s741 + $0x1b0] sm:%s730] %v778
                %v780 = vld [vmem:[%s740 + $0x130] sm:%s730]
                %781 = vst [vmem:[%s741 + $0x1c8] sm:%s730] %v780
                %v782 = vld [vmem:[%s740 + $0x140] sm:%s730]
                %783 = vst [vmem:[%s741 + $0x1e0] sm:%s730] %v782
                %v784 = vld [vmem:[%s740 + $0x150] sm:%s730]
                %785 = vst [vmem:[%s741 + $0x1f8] sm:%s730] %v784
                %v786 = vld [vmem:[%s740 + $0x160] sm:%s730]
                %787 = vst [vmem:[%s741 + $0x210] sm:%s730] %v786
                %v788 = vld [vmem:[%s740 + $0x170] sm:%s730]
                %789 = vst [vmem:[%s741 + $0x228] sm:%s730] %v788
                %v790 = vld [vmem:[%s740 + $0x180] sm:%s730]
                %791 = vst [vmem:[%s741 + $0x240] sm:%s730] %v790
                %v792 = vld [vmem:[%s740 + $0x190] sm:%s730]
                %793 = vst [vmem:[%s741 + $0x258] sm:%s730] %v792
                %v794 = vld [vmem:[%s740 + $0x1a0] sm:%s730]
                %795 = vst [vmem:[%s741 + $0x270] sm:%s730] %v794
                %v796 = vld [vmem:[%s740 + $0x1b0] sm:%s730]
                %797 = vst [vmem:[%s741 + $0x288] sm:%s730] %v796
                %v798 = vld [vmem:[%s740 + $0x1c0] sm:%s730]
                %799 = vst [vmem:[%s741 + $0x2a0] sm:%s730] %v798
                %v800 = vld [vmem:[%s740 + $0x1d0] sm:%s730]
                %801 = vst [vmem:[%s741 + $0x2b8] sm:%s730] %v800
                %v802 = vld [vmem:[%s740 + $0x1e0] sm:%s730]
                %803 = vst [vmem:[%s741 + $0x2d0] sm:%s730] %v802
                %v804 = vld [vmem:[%s740 + $0x1f0] sm:%s730]
                %805 = vst [vmem:[%s741 + $0x2e8] sm:%s730] %v804
                %v806 = vld [vmem:[%s740 + $0x200] sm:%s730]
                %807 = vst [vmem:[%s741 + $0x300] sm:%s730] %v806
                %v808 = vld [vmem:[%s740 + $0x210] sm:%s730]
                %809 = vst [vmem:[%s741 + $0x318] sm:%s730] %v808
                %v810 = vld [vmem:[%s740 + $0x220] sm:%s730]
                %811 = vst [vmem:[%s741 + $0x330] sm:%s730] %v810
                %v812 = vld [vmem:[%s740 + $0x230] sm:%s730]
                %813 = vst [vmem:[%s741 + $0x348] sm:%s730] %v812
                %v814 = vld [vmem:[%s740 + $0x240] sm:%s730]
                %815 = vst [vmem:[%s741 + $0x360] sm:%s730] %v814
                %v816 = vld [vmem:[%s740 + $0x250] sm:%s730]
                %817 = vst [vmem:[%s741 + $0x378] sm:%s730] %v816
                %v818 = vld [vmem:[%s740 + $0x260] sm:%s730]
                %819 = vst [vmem:[%s741 + $0x390] sm:%s730] %v818
                %v820 = vld [vmem:[%s740 + $0x270] sm:%s730]
                %821 = vst [vmem:[%s741 + $0x3a8] sm:%s730] %v820
                %v822 = vld [vmem:[%s740 + $0x280] sm:%s730]
                %823 = vst [vmem:[%s741 + $0x3c0] sm:%s730] %v822
                %v824 = vld [vmem:[%s740 + $0x290] sm:%s730]
                %825 = vst [vmem:[%s741 + $0x3d8] sm:%s730] %v824
                %v826 = vld [vmem:[%s740 + $0x2a0] sm:%s730]
                %827 = vst [vmem:[%s741 + $0x3f0] sm:%s730] %v826
                %v828 = vld [vmem:[%s740 + $0x2b0] sm:%s730]
                %829 = vst [vmem:[%s741 + $0x408] sm:%s730] %v828
                %v830 = vld [vmem:[%s740 + $0x2c0] sm:%s730]
                %831 = vst [vmem:[%s741 + $0x420] sm:%s730] %v830
                %v832 = vld [vmem:[%s740 + $0x2d0] sm:%s730]
                %833 = vst [vmem:[%s741 + $0x438] sm:%s730] %v832
                %v834 = vld [vmem:[%s740 + $0x2e0] sm:%s730]
                %835 = vst [vmem:[%s741 + $0x450] sm:%s730] %v834
                %v836 = vld [vmem:[%s740 + $0x2f0] sm:%s730]
                %837 = vst [vmem:[%s741 + $0x468] sm:%s730] %v836
                %v838 = vld [vmem:[%s740 + $0x300] sm:%s730]
                %839 = vst [vmem:[%s741 + $0x480] sm:%s730] %v838
                %s840 = sadd.s32 1, %s739
                %p841 = scmp.ge.s32.totalorder %s840, %s731
                %s842 = scalar_select %p841, 0, %s840
                %s843 = smul.u32 %s842, 784
                %s844 = smul.u32 %s842, 1176
                %s845 = scalar_lea.vmem %s700, %s843 [#allocation4]
                %s846 = scalar_lea.vmem %s718, %s844
              $region49: #{tpu_custom_call.1} parent=43 // loop_footer
                %s736 = sadd.s32 %s734, 1
              $region50: #{tpu_custom_call.1} parent=43 // loop_footer_branch
                %733 = sbr.rel target = $region46
              $region51: #{tpu_custom_call.1} parent=43 // loop_exit
                _
              %s847 = sdiv.u32.pop %s706, 49
              %s848 = srem.u32.pop %s706, 49
              %s849 = smul.u32 %s847, 49
              %s850 = smul.u32 16, %s849
              %s851 = scalar_lea.vmem %s700, %s850 [#allocation4]
              %s852 = smul.u32 24, %s849
              %s853 = scalar_lea.vmem %s718, %s852
              // While loop
              $region52: #{tpu_custom_call.1} parent=43 // loop_pre_header
                _
              $region53: #{tpu_custom_call.1} parent=43 // loop_header
                %s855 = sphi 0, %s857
                %p856 = scmp.ge.s32.totalorder %s855, %s848
                %s860 = sphi 0, %s867
                %s861 = sphi %s851, %s870
                %s862 = sphi %s853, %s871
              $region54: #{tpu_custom_call.1} parent=43 // loop_header_branch
                %859 = sbr.rel (%p856) target = $region58
              $region55: #{tpu_custom_call.1} parent=43 // loop_body
                %v863 = vld [vmem:[%s861] sm:%s730]
                %864 = vst [vmem:[%s862] sm:%s730] %v863
                %s865 = sadd.s32 1, %s860
                %p866 = scmp.ge.s32.totalorder %s865, %s848
                %s867 = scalar_select %p866, 0, %s865
                %s868 = smul.u32 %s867, 16
                %s869 = smul.u32 %s867, 24
                %s870 = scalar_lea.vmem %s851, %s868 [#allocation4]
                %s871 = scalar_lea.vmem %s853, %s869
              $region56: #{tpu_custom_call.1} parent=43 // loop_footer
                %s857 = sadd.s32 %s855, 1
              $region57: #{tpu_custom_call.1} parent=43 // loop_footer_branch
                %854 = sbr.rel target = $region53
              $region58: #{tpu_custom_call.1} parent=43 // loop_exit
                _
            $region44: #{tpu_custom_call.1} parent=35 // pred_fallthru
              _
          $region36: #{tpu_custom_call.1} parent=31 // pred_fallthru
            _
          %1511 = vnop
        $region32: #{tpu_custom_call.1} parent=23 // pred_fallthru
          _
      $region24: #{tpu_custom_call.1} parent=5 // pred_fallthru
        _
      %p1512 = scmp.le.s32.totalorder 2, %s10
      // Predicated region
      $region123: #{tpu_custom_call.1} parent=5 // pred_check
        %p1513 = pneg %p1512
      $region124: #{tpu_custom_call.1} parent=5 // pred_check_branch
        %1515 = sbr.rel (%p1513) target = $region126
      $region125: #{tpu_custom_call.1} parent=5 // pred_region
        %s1516 = ssub.s32 %s10, 2
        // Predicated region
        $region127: #{tpu_custom_call.1} parent=125 // pred_check
          %p1517 = pneg %p92
        $region128: #{tpu_custom_call.1} parent=125 // pred_check_branch
          %1519 = sbr.rel (%p1517) target = $region130
        $region129: #{tpu_custom_call.1} parent=125 // pred_region
          %s1520 = sand.u32 %s77, 1
          %s1521 = sand.u32 %s77, 1
          %s1522 = smul.addr %s1521, 1024
          %s1523 = scalar_lea.vmem [#allocation4], %s1522
        $region130: #{tpu_custom_call.1} parent=125 // pred_fallthru
          _
      $region126: #{tpu_custom_call.1} parent=5 // pred_fallthru
        _
    $region6: #{tpu_custom_call.1} parent=1 // loop_footer
      %s14 = sadd.s32 1, %s10
    $region7: #{tpu_custom_call.1} parent=1 // loop_footer_branch
      %9 = sbr.rel target = $region3
    $region8: #{tpu_custom_call.1} parent=1 // loop_exit
      _
    %1524 = vsyncpa [#allocation3], 1
    %s1525 = scalar_lea.sflag [#allocation3], 1
    %1526 = vsyncpa %s1525, 1

</llo_original>
